<compile_context>
chip_gen: v7x
topology: tpu7x:2x2x1
jax: 0.10.0
libtpu: 0.0.40
codegen_flags: <defaults>
</compile_context>

<pallas_src>
import functools

import jax
import jax.numpy as jnp
import numpy as np
from jax import lax
from jax.experimental import pallas as pl
from jax.experimental.pallas import tpu as pltpu

_HALO = 8   # halo rows per side (>= 3 needed; 8 keeps sublane slices aligned)


def _round_up(x, m):
    return ((x + m - 1) // m) * m


# --------------------------------------------------------------------------- #
# Kernel
# --------------------------------------------------------------------------- #
def _normdiff_kernel(center_ref, halo_ref, nd_ref, diff_ref, mask_ref, *,
                     nd_const, halo, tile_h, img_h, img_w, w_pad):
    # TODO(synk): MinModDiff / PixelNorm sources were not provided; "dz == 1",
    # "nd_const is the PixelNorm epsilon" and zero one-sided diffs at the image
    # border are documented assumptions carried over from the previous version.
    th2 = tile_h + 2 * halo
    hal = halo_ref[0, 0]                                  # (2*halo, w_pad)
    xs = jnp.concatenate([hal[:halo], center_ref[0], hal[halo:]], axis=0)

    valid = xs != 0.0
    depth = jnp.where(valid, xs, -100.0)                  # sentinel (as in module)

    # (th2, 1) global image row of every strip row, (1, w_pad) image column.
    grow = (lax.broadcasted_iota(jnp.int32, (th2, 1), 0)
            + (pl.program_id(1) * tile_h - halo))
    col = lax.broadcasted_iota(jnp.int32, (1, w_pad), 1)

    # ---- MinModDiff: minmod of forward/backward one-sided differences ------
    fwd_x = jnp.where(col < img_w - 1, pltpu.roll(depth, w_pad - 1, 1) - depth, 0.0)
    bwd_x = jnp.where(col >= 1, depth - pltpu.roll(depth, 1, 1), 0.0)
    fwd_y = jnp.where(grow < img_h - 1, pltpu.roll(depth, th2 - 1, 0) - depth, 0.0)
    bwd_y = jnp.where(grow >= 1, depth - pltpu.roll(depth, 1, 0), 0.0)

    def minmod(a, b):   # compare/select form (no jnp.sign)
        return jnp.where(a * b > 0.0, jnp.where(jnp.abs(a) < jnp.abs(b), a, b), 0.0)

    dx = minmod(fwd_x, bwd_x)                             # diff channel 0
    dy = minmod(fwd_y, bwd_y)                             # diff channel 1 (ch 2 == 1)
    invd = (jnp.abs(dx) > 10.0) | (jnp.abs(dy) > 10.0)

    # ---- PixelNorm over channels, dz == 1 folded into the constant ----------
    inv_norm = lax.rsqrt(dx * dx + dy * dy + (1.0 + nd_const))

    keep = valid & jnp.logical_not(invd)
    keep &= (grow >= 0) & (grow < img_h)                  # halo / H-padding rows
    if img_w < w_pad:
        keep &= col < img_w                               # lane-padding columns

    lo, hi = halo, halo + tile_h                          # aligned output window
    odt = nd_ref.dtype

    # Store diff / mask first so dx / dy / keep die before the pool temporaries.
    keep_c = keep[lo:hi]
    diff_ref[0, 0] = jnp.where(keep_c, dx[lo:hi], 0.0).astype(odt)
    diff_ref[0, 1] = jnp.where(keep_c, dy[lo:hi], 0.0).astype(odt)
    diff_ref[0, 2] = keep_c.astype(odt)
    mask_ref[0] = jnp.where(keep_c, 0, 1).astype(jnp.uint8)

    # ---- 5x5 avg pool (stride 1, zero pad, /25) on the keep-masked nd map ---
    # Channels are lane-packed: the 4 sublane rolls of the row pass are issued
    # once, and the column pass only covers the tile_h output rows.
    packed = jnp.concatenate([jnp.where(keep, dx * inv_norm, 0.0),
                              jnp.where(keep, dy * inv_norm, 0.0),
                              jnp.where(keep, inv_norm, 0.0)], axis=1)
    rs = packed
    for s in (1, th2 - 1, 2, th2 - 2):                    # row (sublane) pass
        rs = rs + pltpu.roll(packed, s, 0)
    rs = rs[lo:hi]                                        # aligned row slice

    wp3 = 3 * w_pad
    guard = w_pad - img_w                                 # lane pad absorbs seams
    if guard < 2:
        colw = jnp.concatenate([col, col, col], axis=1)   # per-channel column idx
    cs = rs
    for m in (1, 2):                                      # column (lane) pass
        tp = pltpu.roll(rs, m, 1)                         # rs[:, c - m]
        tn = pltpu.roll(rs, wp3 - m, 1)                   # rs[:, c + m]
        if guard < m:
            tp = jnp.where(colw >= m, tp, 0.0)
            tn = jnp.where(colw < w_pad - m, tn, 0.0)
        cs = cs + tp + tn
    nd_pool = cs * (1.0 / 25.0)

    nd_ref[0, 0] = nd_pool[:, 0:w_pad].astype(odt)
    nd_ref[0, 1] = nd_pool[:, w_pad:2 * w_pad].astype(odt)
    nd_ref[0, 2] = nd_pool[:, 2 * w_pad:wp3].astype(odt)


# --------------------------------------------------------------------------- #
# Wrapper
# --------------------------------------------------------------------------- #
def _vmem_limit_bytes():
    try:
        cap = int(pltpu.get_tpu_info().vmem_capacity_bytes)
    except Exception:
        cap = 64 * 1024 * 1024                            # v7x-sized fallback
    return int(min(cap * 3 // 4, 100 * 1024 * 1024))      # ~48 MiB v7x / 96 MiB v5e,v6e


def _choose_tile_h(H, w_pad, N, out_bytes, vmem_limit):
    """Largest multiple-of-32 strip height whose working set fits in VMEM."""
    h32 = _round_up(H, 32)
    # per padded row: double-buffered in/out blocks + ~16 live f32 temporaries
    row_bytes = w_pad * (2 * 4 + 2 * (6 * out_bytes + 1) + 16 * 4)
    cap = (int(vmem_limit * 0.7) // row_bytes) // 32 * 32
    cap = max(32, min(512, cap))
    if h32 <= cap:                                        # one strip covers the image
        if N == 1 and h32 >= 64:
            # keep >= 2 parallel strips so both v7x TensorCores get work
            divs = [d for d in range(32, h32 // 2 + 1, 32) if h32 % d == 0]
            if divs:
                return max(divs)
        return h32
    if H % 32 == 0:                                       # prefer exact-H tiling
        divs = [d for d in range(32, cap + 1, 32) if H % d == 0]
        if divs and max(divs) >= max(64, cap // 4):
            return max(divs)
    return cap


def norm_diff(x, nd_const=1e-6, *, tile_h=None, out_dtype=jnp.float32):
    """x: (N, 1, H, W) float32 depth map -> (nd_final, diff_final, invalid_mask)."""
    N, C, H, W = x.shape
    assert C == 1, "NormDiff expects a single-channel depth map (N, 1, H, W)"
    depth = x[:, 0, :, :].astype(jnp.float32)

    w_pad = _round_up(W, 128)
    out_bytes = jnp.dtype(out_dtype).itemsize
    vmem_limit = _vmem_limit_bytes()
    if tile_h is None:
        tile_h = _choose_tile_h(H, w_pad, N, out_bytes, vmem_limit)
    assert tile_h % 32 == 0, "tile_h must be a multiple of 32 (uint8 mask tiling)"
    num_th = pl.cdiv(H, tile_h)
    h_core = num_th * tile_h
    padded = (h_core != H) or (w_pad != W)

    # zero-pad only when not already lane/strip aligned (pad rows/cols are
    # masked in-kernel, so a plain zero pad is enough -- no edge replicate).
    center = depth if not padded else jnp.pad(
        depth, ((0, 0), (0, h_core - H), (0, w_pad - W)))

    # tiny per-strip halo side input: 2*HALO rows per strip (clamped indices;
    # rows outside the image are masked in-kernel, their content is irrelevant).
    t0 = jnp.arange(num_th, dtype=jnp.int32)[:, None] * tile_h
    off = jnp.arange(_HALO, dtype=jnp.int32)[None, :]
    halo_idx = jnp.concatenate(
        [jnp.clip(t0 - _HALO + off, 0, h_core - 1),
         jnp.clip(t0 + tile_h + off, 0, h_core - 1)], axis=1)   # (num_th, 2*HALO)
    halos = center[:, halo_idx, :]                              # (N, num_th, 2*HALO, w_pad)

    kernel = functools.partial(
        _normdiff_kernel, nd_const=float(nd_const), halo=_HALO, tile_h=tile_h,
        img_h=H, img_w=W, w_pad=w_pad)
    plane_spec = pl.BlockSpec((1, 3, tile_h, w_pad), lambda n, t: (n, 0, t, 0))
    mask_spec = pl.BlockSpec((1, tile_h, w_pad), lambda n, t: (n, t, 0))
    out_shape = (
        jax.ShapeDtypeStruct((N, 3, h_core, w_pad), out_dtype),   # nd_final
        jax.ShapeDtypeStruct((N, 3, h_core, w_pad), out_dtype),   # diff_final
        jax.ShapeDtypeStruct((N, h_core, w_pad), jnp.uint8),      # ~keep (1 plane)
    )
    px = N * num_th * (tile_h + 2 * _HALO) * w_pad
    nd_p, diff_p, mask_p = pl.pallas_call(
        kernel,
        out_shape=out_shape,
        grid=(N, num_th),
        in_specs=[pl.BlockSpec((1, tile_h, w_pad), lambda n, t: (n, t, 0)),
                  pl.BlockSpec((1, 1, 2 * _HALO, w_pad), lambda n, t: (n, t, 0, 0))],
        out_specs=(plane_spec, plane_spec, mask_spec),
        compiler_params=pltpu.CompilerParams(
            dimension_semantics=("parallel", "parallel"),
            vmem_limit_bytes=vmem_limit),
        cost_estimate=pl.CostEstimate(
            flops=130 * px, transcendentals=px,
            bytes_accessed=4 * px + (6 * out_bytes + 1) * N * h_core * w_pad),
    )(center, halos)

    if padded:                                  # only awkward shapes pay this pass
        nd_p = nd_p[:, :, :H, :W]
        diff_p = diff_p[:, :, :H, :W]
        mask_p = mask_p[:, :H, :W]
    # NOTE: downstream could consume the single-plane uint8 mask directly; the
    # (N, 3, H, W) bool expand below only mirrors the PyTorch module's output.
    invalid = jnp.broadcast_to(mask_p[:, None, :, :] != 0, (N, 3, H, W))
    return nd_p, diff_p, invalid


# --------------------------------------------------------------------------- #
# Pure-jnp reference (same MinModDiff / PixelNorm assumptions) for validation
# --------------------------------------------------------------------------- #
def _minmod_ref(a, b):
    return jnp.where(a * b > 0.0, jnp.where(jnp.abs(a) < jnp.abs(b), a, b), 0.0)


def _one_sided(depth, axis):
    d = jnp.diff(depth, axis=axis)
    zshape = list(depth.shape)
    zshape[axis] = 1
    z = jnp.zeros(zshape, depth.dtype)
    return jnp.concatenate([d, z], axis=axis), jnp.concatenate([z, d], axis=axis)


def norm_diff_ref(x, nd_const=1e-6):
    N, _, H, W = x.shape
    d = x[:, 0].astype(jnp.float32)
    valid = d != 0.0
    depth = jnp.where(valid, d, -100.0)
    fwd_x, bwd_x = _one_sided(depth, axis=2)
    fwd_y, bwd_y = _one_sided(depth, axis=1)
    dx = _minmod_ref(fwd_x, bwd_x)
    dy = _minmod_ref(fwd_y, bwd_y)
    invd = (jnp.abs(dx) > 10.0) | (jnp.abs(dy) > 10.0)
    inv_norm = jax.lax.rsqrt(dx * dx + dy * dy + (1.0 + float(nd_const)))
    keep = (valid & ~invd)[:, None]                        # (N, 1, H, W)
    diff = jnp.stack([dx, dy, jnp.ones_like(dx)], axis=1)
    nd = diff * inv_norm[:, None]
    nd_final = jnp.where(keep, nd, 0.0)
    diff_final = jnp.where(keep, diff, 0.0)
    ndp = jnp.pad(nd_final, ((0, 0), (0, 0), (2, 2), (2, 2)))   # zero pad, /25
    acc = jnp.zeros_like(nd_final)
    for di in range(5):
        for dj in range(5):
            acc = acc + ndp[:, :, di:di + H, dj:dj + W]
    nd_final = acc / 25.0
    invalid = jnp.broadcast_to(~keep, (N, 3, H, W))
    return nd_final, diff_final, invalid


if __name__ == "__main__":
    key = jax.random.PRNGKey(0)
    configs = [
        dict(N=2, H=136, W=20, tile_h=64),     # padded W & H, 3 strips, guard >= 2
        dict(N=2, H=64, W=128, tile_h=None),   # fully aligned fast path, guard == 0
        dict(N=1, H=128, W=128, tile_h=None),  # N==1 -> auto-split into 2 strips
    ]
    for cfg in configs:
        key, k1, k2 = jax.random.split(key, 3)
        shape = (cfg["N"], 1, cfg["H"], cfg["W"])
        depth = jax.random.uniform(k1, shape, jnp.float32, 0.5, 5.0)
        hole = jax.random.bernoulli(k2, 0.85, shape)
        x = depth * hole.astype(jnp.float32)               # zeros mark invalid pixels

        nd, df, inv = norm_diff(x, nd_const=1e-6, tile_h=cfg["tile_h"])
        jax.block_until_ready((nd, df, inv))

        nd_r, df_r, inv_r = norm_diff_ref(x, nd_const=1e-6)
        assert nd.shape == (cfg["N"], 3, cfg["H"], cfg["W"]) and nd.dtype == jnp.float32
        assert df.shape == nd.shape and df.dtype == jnp.float32
        assert inv.shape == nd.shape and inv.dtype == jnp.bool_
        np.testing.assert_allclose(np.asarray(nd), np.asarray(nd_r), rtol=1e-4, atol=1e-4)
        np.testing.assert_allclose(np.asarray(df), np.asarray(df_r), rtol=1e-4, atol=1e-4)
        assert np.array_equal(np.asarray(inv), np.asarray(inv_r))
    print("KERNEL_OK")
</pallas_src>

<mosaic_0001>
module attributes {stable_mosaic.version = 11 : i64} {
  func.func @_normdiff_kernel(%arg0: i32, %arg1: i32, %arg2: memref<1x64x128xf32, #tpu.memory_space<vmem>>, %arg3: memref<1x1x16x128xf32, #tpu.memory_space<vmem>>, %arg4: memref<1x3x64x128xf32, #tpu.memory_space<vmem>>, %arg5: memref<1x3x64x128xf32, #tpu.memory_space<vmem>>, %arg6: memref<1x64x128xi8, #tpu.memory_space<vmem>>) attributes {dimension_semantics = [#tpu.dimension_semantics<parallel>, #tpu.dimension_semantics<parallel>], iteration_bounds = array<i64: 2, 3>, scalar_prefetch = 0 : i64, scratch_operands = 0 : i64, tpu.core_type = #tpu.core_type<tc>, window_params = [{transform_indices = @transform_0, window_bounds = array<i64: 1, 64, 128>}, {transform_indices = @transform_1, window_bounds = array<i64: 1, 1, 16, 128>}, {transform_indices = @transform_2, window_bounds = array<i64: 1, 3, 64, 128>}, {transform_indices = @transform_3, window_bounds = array<i64: 1, 3, 64, 128>}, {transform_indices = @transform_4, window_bounds = array<i64: 1, 64, 128>}]} {
    %c0 = arith.constant 0 : index
    %c0_0 = arith.constant 0 : index
    %c0_1 = arith.constant 0 : index
    %c0_2 = arith.constant 0 : index
    %0 = vector.load %arg3[%c0, %c0_0, %c0_1, %c0_2] : memref<1x1x16x128xf32, #tpu.memory_space<vmem>>, vector<1x1x16x128xf32>
    %1 = vector.shape_cast %0 : vector<1x1x16x128xf32> to vector<16x128xf32>
    %2 = vector.extract_strided_slice %1 {offsets = [0, 0], sizes = [8, 128], strides = [1, 1]} : vector<16x128xf32> to vector<8x128xf32>
    %c0_3 = arith.constant 0 : index
    %c0_4 = arith.constant 0 : index
    %c0_5 = arith.constant 0 : index
    %3 = vector.load %arg2[%c0_3, %c0_4, %c0_5] : memref<1x64x128xf32, #tpu.memory_space<vmem>>, vector<1x64x128xf32>
    %4 = vector.shape_cast %3 : vector<1x64x128xf32> to vector<64x128xf32>
    %5 = vector.extract_strided_slice %1 {offsets = [8, 0], sizes = [8, 128], strides = [1, 1]} : vector<16x128xf32> to vector<8x128xf32>
    %6 = tpu.concatenate %2, %4, %5 in 0 : vector<8x128xf32>, vector<64x128xf32>, vector<8x128xf32> -> vector<80x128xf32>
    %cst = arith.constant 0.000000e+00 : f32
    %7 = vector.broadcast %cst : f32 to vector<80x128xf32>
    %8 = arith.cmpf one, %6, %7 : vector<80x128xf32>
    %cst_6 = arith.constant -1.000000e+02 : f32
    %9 = vector.broadcast %cst_6 : f32 to vector<80x128xf32>
    %10 = arith.select %8, %6, %9 : vector<80x128xi1>, vector<80x128xf32>
    %11 = tpu.iota {dimensions = array<i32: 0>} : vector<80x1xi32>
    %c64_i32 = arith.constant 64 : i32
    %12 = arith.muli %arg1, %c64_i32 : i32
    %c8_i32 = arith.constant 8 : i32
    %13 = arith.subi %12, %c8_i32 : i32
    %14 = vector.broadcast %13 : i32 to vector<80x1xi32>
    %15 = arith.addi %11, %14 : vector<80x1xi32>
    %16 = tpu.iota {dimensions = array<i32: 1>} : vector<1x128xi32>
    %c19_i32 = arith.constant 19 : i32
    %17 = vector.broadcast %c19_i32 : i32 to vector<1x128xi32>
    %18 = arith.cmpi slt, %16, %17 : vector<1x128xi32>
    %c127_i32 = arith.constant 127 : i32
    %19 = tpu.dynamic_rotate %10 by %c127_i32 dim 1 : vector<80x128xf32>, i32 -> vector<80x128xf32>
    %20 = arith.subf %19, %10 : vector<80x128xf32>
    %cst_7 = arith.constant 0.000000e+00 : f32
    %21 = vector.shape_cast %18 : vector<1x128xi1> to vector<1x128xi1>
    %22 = vector.broadcast %21 : vector<1x128xi1> to vector<80x128xi1>
    %23 = vector.broadcast %cst_7 : f32 to vector<80x128xf32>
    %24 = arith.select %22, %20, %23 : vector<80x128xi1>, vector<80x128xf32>
    %c1_i32 = arith.constant 1 : i32
    %25 = vector.broadcast %c1_i32 : i32 to vector<1x128xi32>
    %26 = arith.cmpi sge, %16, %25 : vector<1x128xi32>
    %c1_i32_8 = arith.constant 1 : i32
    %27 = tpu.dynamic_rotate %10 by %c1_i32_8 dim 1 : vector<80x128xf32>, i32 -> vector<80x128xf32>
    %28 = arith.subf %10, %27 : vector<80x128xf32>
    %cst_9 = arith.constant 0.000000e+00 : f32
    %29 = vector.shape_cast %26 : vector<1x128xi1> to vector<1x128xi1>
    %30 = vector.broadcast %29 : vector<1x128xi1> to vector<80x128xi1>
    %31 = vector.broadcast %cst_9 : f32 to vector<80x128xf32>
    %32 = arith.select %30, %28, %31 : vector<80x128xi1>, vector<80x128xf32>
    %c135_i32 = arith.constant 135 : i32
    %33 = vector.broadcast %c135_i32 : i32 to vector<80x1xi32>
    %34 = arith.cmpi slt, %15, %33 : vector<80x1xi32>
    %c79_i32 = arith.constant 79 : i32
    %35 = tpu.dynamic_rotate %10 by %c79_i32 dim 0 : vector<80x128xf32>, i32 -> vector<80x128xf32>
    %36 = arith.subf %35, %10 : vector<80x128xf32>
    %cst_10 = arith.constant 0.000000e+00 : f32
    %37 = vector.shape_cast %34 : vector<80x1xi1> to vector<80x1xi1>
    %38 = vector.broadcast %37 : vector<80x1xi1> to vector<80x128xi1>
    %39 = vector.broadcast %cst_10 : f32 to vector<80x128xf32>
    %40 = arith.select %38, %36, %39 : vector<80x128xi1>, vector<80x128xf32>
    %c1_i32_11 = arith.constant 1 : i32
    %41 = vector.broadcast %c1_i32_11 : i32 to vector<80x1xi32>
    %42 = arith.cmpi sge, %15, %41 : vector<80x1xi32>
    %c1_i32_12 = arith.constant 1 : i32
    %43 = tpu.dynamic_rotate %10 by %c1_i32_12 dim 0 : vector<80x128xf32>, i32 -> vector<80x128xf32>
    %44 = arith.subf %10, %43 : vector<80x128xf32>
    %cst_13 = arith.constant 0.000000e+00 : f32
    %45 = vector.shape_cast %42 : vector<80x1xi1> to vector<80x1xi1>
    %46 = vector.broadcast %45 : vector<80x1xi1> to vector<80x128xi1>
    %47 = vector.broadcast %cst_13 : f32 to vector<80x128xf32>
    %48 = arith.select %46, %44, %47 : vector<80x128xi1>, vector<80x128xf32>
    %49 = arith.mulf %24, %32 : vector<80x128xf32>
    %cst_14 = arith.constant 0.000000e+00 : f32
    %50 = vector.broadcast %cst_14 : f32 to vector<80x128xf32>
    %51 = arith.cmpf ogt, %49, %50 : vector<80x128xf32>
    %52 = math.absf %24 : vector<80x128xf32>
    %53 = math.absf %32 : vector<80x128xf32>
    %54 = arith.cmpf olt, %52, %53 : vector<80x128xf32>
    %55 = arith.select %54, %24, %32 : vector<80x128xi1>, vector<80x128xf32>
    %cst_15 = arith.constant 0.000000e+00 : f32
    %56 = vector.broadcast %cst_15 : f32 to vector<80x128xf32>
    %57 = arith.select %51, %55, %56 : vector<80x128xi1>, vector<80x128xf32>
    %58 = arith.mulf %40, %48 : vector<80x128xf32>
    %cst_16 = arith.constant 0.000000e+00 : f32
    %59 = vector.broadcast %cst_16 : f32 to vector<80x128xf32>
    %60 = arith.cmpf ogt, %58, %59 : vector<80x128xf32>
    %61 = math.absf %40 : vector<80x128xf32>
    %62 = math.absf %48 : vector<80x128xf32>
    %63 = arith.cmpf olt, %61, %62 : vector<80x128xf32>
    %64 = arith.select %63, %40, %48 : vector<80x128xi1>, vector<80x128xf32>
    %cst_17 = arith.constant 0.000000e+00 : f32
    %65 = vector.broadcast %cst_17 : f32 to vector<80x128xf32>
    %66 = arith.select %60, %64, %65 : vector<80x128xi1>, vector<80x128xf32>
    %67 = math.absf %57 : vector<80x128xf32>
    %cst_18 = arith.constant 1.000000e+01 : f32
    %68 = vector.broadcast %cst_18 : f32 to vector<80x128xf32>
    %69 = arith.cmpf ogt, %67, %68 : vector<80x128xf32>
    %70 = math.absf %66 : vector<80x128xf32>
    %cst_19 = arith.constant 1.000000e+01 : f32
    %71 = vector.broadcast %cst_19 : f32 to vector<80x128xf32>
    %72 = arith.cmpf ogt, %70, %71 : vector<80x128xf32>
    %73 = arith.ori %69, %72 : vector<80x128xi1>
    %74 = arith.mulf %57, %57 : vector<80x128xf32>
    %75 = arith.mulf %66, %66 : vector<80x128xf32>
    %76 = arith.addf %74, %75 : vector<80x128xf32>
    %cst_20 = arith.constant 1.00000095 : f32
    %77 = vector.broadcast %cst_20 : f32 to vector<80x128xf32>
    %78 = arith.addf %76, %77 : vector<80x128xf32>
    %79 = math.rsqrt %78 : vector<80x128xf32>
    %cst_21 = arith.constant dense<true> : vector<80x128xi1>
    %80 = arith.xori %73, %cst_21 : vector<80x128xi1>
    %81 = arith.andi %8, %80 : vector<80x128xi1>
    %c0_i32 = arith.constant 0 : i32
    %82 = vector.broadcast %c0_i32 : i32 to vector<80x1xi32>
    %83 = arith.cmpi sge, %15, %82 : vector<80x1xi32>
    %c136_i32 = arith.constant 136 : i32
    %84 = vector.broadcast %c136_i32 : i32 to vector<80x1xi32>
    %85 = arith.cmpi slt, %15, %84 : vector<80x1xi32>
    %86 = arith.andi %83, %85 : vector<80x1xi1>
    %87 = vector.broadcast %86 : vector<80x1xi1> to vector<80x128xi1>
    %88 = arith.andi %81, %87 : vector<80x128xi1>
    %c20_i32 = arith.constant 20 : i32
    %89 = vector.broadcast %c20_i32 : i32 to vector<1x128xi32>
    %90 = arith.cmpi slt, %16, %89 : vector<1x128xi32>
    %91 = vector.broadcast %90 : vector<1x128xi1> to vector<80x128xi1>
    %92 = arith.andi %88, %91 : vector<80x128xi1>
    %93 = vector.extract_strided_slice %92 {offsets = [8, 0], sizes = [64, 128], strides = [1, 1]} : vector<80x128xi1> to vector<64x128xi1>
    %94 = vector.extract_strided_slice %57 {offsets = [8, 0], sizes = [64, 128], strides = [1, 1]} : vector<80x128xf32> to vector<64x128xf32>
    %cst_22 = arith.constant 0.000000e+00 : f32
    %95 = vector.broadcast %cst_22 : f32 to vector<64x128xf32>
    %96 = arith.select %93, %94, %95 : vector<64x128xi1>, vector<64x128xf32>
    %c0_23 = arith.constant 0 : index
    %c0_24 = arith.constant 0 : index
    %c0_25 = arith.constant 0 : index
    %c0_26 = arith.constant 0 : index
    %97 = vector.load %arg5[%c0_23, %c0_24, %c0_25, %c0_26] : memref<1x3x64x128xf32, #tpu.memory_space<vmem>>, vector<1x1x64x128xf32>
    %98 = vector.shape_cast %97 : vector<1x1x64x128xf32> to vector<64x128xf32>
    %99 = vector.shape_cast %96 : vector<64x128xf32> to vector<1x1x64x128xf32>
    tpu.vector_store %arg5[%c0_23, %c0_24, %c0_25, %c0_26], %99 {strides = array<i32>} : memref<1x3x64x128xf32, #tpu.memory_space<vmem>>, vector<1x1x64x128xf32>,
    %100 = vector.extract_strided_slice %66 {offsets = [8, 0], sizes = [64, 128], strides = [1, 1]} : vector<80x128xf32> to vector<64x128xf32>
    %cst_27 = arith.constant 0.000000e+00 : f32
    %101 = vector.broadcast %cst_27 : f32 to vector<64x128xf32>
    %102 = arith.select %93, %100, %101 : vector<64x128xi1>, vector<64x128xf32>
    %c0_28 = arith.constant 0 : index
    %c1 = arith.constant 1 : index
    %c0_29 = arith.constant 0 : index
    %c0_30 = arith.constant 0 : index
    %103 = vector.load %arg5[%c0_28, %c1, %c0_29, %c0_30] : memref<1x3x64x128xf32, #tpu.memory_space<vmem>>, vector<1x1x64x128xf32>
    %104 = vector.shape_cast %103 : vector<1x1x64x128xf32> to vector<64x128xf32>
    %105 = vector.shape_cast %102 : vector<64x128xf32> to vector<1x1x64x128xf32>
    tpu.vector_store %arg5[%c0_28, %c1, %c0_29, %c0_30], %105 {strides = array<i32>} : memref<1x3x64x128xf32, #tpu.memory_space<vmem>>, vector<1x1x64x128xf32>,
    %106 = arith.extui %93 : vector<64x128xi1> to vector<64x128xi32>
    %107 = arith.sitofp %106 : vector<64x128xi32> to vector<64x128xf32>
    %c0_31 = arith.constant 0 : index
    %c2 = arith.constant 2 : index
    %c0_32 = arith.constant 0 : index
    %c0_33 = arith.constant 0 : index
    %108 = vector.load %arg5[%c0_31, %c2, %c0_32, %c0_33] : memref<1x3x64x128xf32, #tpu.memory_space<vmem>>, vector<1x1x64x128xf32>
    %109 = vector.shape_cast %108 : vector<1x1x64x128xf32> to vector<64x128xf32>
    %110 = vector.shape_cast %107 : vector<64x128xf32> to vector<1x1x64x128xf32>
    tpu.vector_store %arg5[%c0_31, %c2, %c0_32, %c0_33], %110 {strides = array<i32>} : memref<1x3x64x128xf32, #tpu.memory_space<vmem>>, vector<1x1x64x128xf32>,
    %c0_i32_34 = arith.constant 0 : i32
    %c1_i32_35 = arith.constant 1 : i32
    %111 = vector.broadcast %c0_i32_34 : i32 to vector<64x128xi32>
    %112 = vector.broadcast %c1_i32_35 : i32 to vector<64x128xi32>
    %113 = arith.select %93, %111, %112 : vector<64x128xi1>, vector<64x128xi32>
    %114 = arith.trunci %113 : vector<64x128xi32> to vector<64x128xi8>
    %c0_36 = arith.constant 0 : index
    %c0_37 = arith.constant 0 : index
    %c0_38 = arith.constant 0 : index
    %115 = vector.load %arg6[%c0_36, %c0_37, %c0_38] : memref<1x64x128xi8, #tpu.memory_space<vmem>>, vector<1x64x128xi8>
    %116 = vector.shape_cast %115 : vector<1x64x128xi8> to vector<64x128xi8>
    %117 = vector.shape_cast %114 : vector<64x128xi8> to vector<1x64x128xi8>
    tpu.vector_store %arg6[%c0_36, %c0_37, %c0_38], %117 {strides = array<i32>} : memref<1x64x128xi8, #tpu.memory_space<vmem>>, vector<1x64x128xi8>,
    %118 = arith.mulf %57, %79 : vector<80x128xf32>
    %cst_39 = arith.constant 0.000000e+00 : f32
    %119 = vector.broadcast %cst_39 : f32 to vector<80x128xf32>
    %120 = arith.select %92, %118, %119 : vector<80x128xi1>, vector<80x128xf32>
    %121 = arith.mulf %66, %79 : vector<80x128xf32>
    %cst_40 = arith.constant 0.000000e+00 : f32
    %122 = vector.broadcast %cst_40 : f32 to vector<80x128xf32>
    %123 = arith.select %92, %121, %122 : vector<80x128xi1>, vector<80x128xf32>
    %cst_41 = arith.constant 0.000000e+00 : f32
    %124 = vector.broadcast %cst_41 : f32 to vector<80x128xf32>
    %125 = arith.select %92, %79, %124 : vector<80x128xi1>, vector<80x128xf32>
    %126 = tpu.concatenate %120, %123, %125 in 1 : vector<80x128xf32>, vector<80x128xf32>, vector<80x128xf32> -> vector<80x384xf32>
    %c1_i32_42 = arith.constant 1 : i32
    %127 = tpu.dynamic_rotate %126 by %c1_i32_42 dim 0 : vector<80x384xf32>, i32 -> vector<80x384xf32>
    %128 = arith.addf %126, %127 : vector<80x384xf32>
    %c79_i32_43 = arith.constant 79 : i32
    %129 = tpu.dynamic_rotate %126 by %c79_i32_43 dim 0 : vector<80x384xf32>, i32 -> vector<80x384xf32>
    %130 = arith.addf %128, %129 : vector<80x384xf32>
    %c2_i32 = arith.constant 2 : i32
    %131 = tpu.dynamic_rotate %126 by %c2_i32 dim 0 : vector<80x384xf32>, i32 -> vector<80x384xf32>
    %132 = arith.addf %130, %131 : vector<80x384xf32>
    %c78_i32 = arith.constant 78 : i32
    %133 = tpu.dynamic_rotate %126 by %c78_i32 dim 0 : vector<80x384xf32>, i32 -> vector<80x384xf32>
    %134 = arith.addf %132, %133 : vector<80x384xf32>
    %135 = vector.extract_strided_slice %134 {offsets = [8, 0], sizes = [64, 384], strides = [1, 1]} : vector<80x384xf32> to vector<64x384xf32>
    %c1_i32_44 = arith.constant 1 : i32
    %136 = tpu.dynamic_rotate %135 by %c1_i32_44 dim 1 : vector<64x384xf32>, i32 -> vector<64x384xf32>
    %c383_i32 = arith.constant 383 : i32
    %137 = tpu.dynamic_rotate %135 by %c383_i32 dim 1 : vector<64x384xf32>, i32 -> vector<64x384xf32>
    %138 = arith.addf %135, %136 : vector<64x384xf32>
    %139 = arith.addf %138, %137 : vector<64x384xf32>
    %c2_i32_45 = arith.constant 2 : i32
    %140 = tpu.dynamic_rotate %135 by %c2_i32_45 dim 1 : vector<64x384xf32>, i32 -> vector<64x384xf32>
    %c382_i32 = arith.constant 382 : i32
    %141 = tpu.dynamic_rotate %135 by %c382_i32 dim 1 : vector<64x384xf32>, i32 -> vector<64x384xf32>
    %142 = arith.addf %139, %140 : vector<64x384xf32>
    %143 = arith.addf %142, %141 : vector<64x384xf32>
    %cst_46 = arith.constant 4.000000e-02 : f32
    %144 = vector.broadcast %cst_46 : f32 to vector<64x384xf32>
    %145 = arith.mulf %143, %144 : vector<64x384xf32>
    %146 = vector.extract_strided_slice %145 {offsets = [0, 0], sizes = [64, 128], strides = [1, 1]} : vector<64x384xf32> to vector<64x128xf32>
    %c0_47 = arith.constant 0 : index
    %c0_48 = arith.constant 0 : index
    %c0_49 = arith.constant 0 : index
    %c0_50 = arith.constant 0 : index
    %147 = vector.load %arg4[%c0_47, %c0_48, %c0_49, %c0_50] : memref<1x3x64x128xf32, #tpu.memory_space<vmem>>, vector<1x1x64x128xf32>
    %148 = vector.shape_cast %147 : vector<1x1x64x128xf32> to vector<64x128xf32>
    %149 = vector.shape_cast %146 : vector<64x128xf32> to vector<1x1x64x128xf32>
    tpu.vector_store %arg4[%c0_47, %c0_48, %c0_49, %c0_50], %149 {strides = array<i32>} : memref<1x3x64x128xf32, #tpu.memory_space<vmem>>, vector<1x1x64x128xf32>,
    %150 = vector.extract_strided_slice %145 {offsets = [0, 128], sizes = [64, 128], strides = [1, 1]} : vector<64x384xf32> to vector<64x128xf32>
    %c0_51 = arith.constant 0 : index
    %c1_52 = arith.constant 1 : index
    %c0_53 = arith.constant 0 : index
    %c0_54 = arith.constant 0 : index
    %151 = vector.load %arg4[%c0_51, %c1_52, %c0_53, %c0_54] : memref<1x3x64x128xf32, #tpu.memory_space<vmem>>, vector<1x1x64x128xf32>
    %152 = vector.shape_cast %151 : vector<1x1x64x128xf32> to vector<64x128xf32>
    %153 = vector.shape_cast %150 : vector<64x128xf32> to vector<1x1x64x128xf32>
    tpu.vector_store %arg4[%c0_51, %c1_52, %c0_53, %c0_54], %153 {strides = array<i32>} : memref<1x3x64x128xf32, #tpu.memory_space<vmem>>, vector<1x1x64x128xf32>,
    %154 = vector.extract_strided_slice %145 {offsets = [0, 256], sizes = [64, 128], strides = [1, 1]} : vector<64x384xf32> to vector<64x128xf32>
    %c0_55 = arith.constant 0 : index
    %c2_56 = arith.constant 2 : index
    %c0_57 = arith.constant 0 : index
    %c0_58 = arith.constant 0 : index
    %155 = vector.load %arg4[%c0_55, %c2_56, %c0_57, %c0_58] : memref<1x3x64x128xf32, #tpu.memory_space<vmem>>, vector<1x1x64x128xf32>
    %156 = vector.shape_cast %155 : vector<1x1x64x128xf32> to vector<64x128xf32>
    %157 = vector.shape_cast %154 : vector<64x128xf32> to vector<1x1x64x128xf32>
    tpu.vector_store %arg4[%c0_55, %c2_56, %c0_57, %c0_58], %157 {strides = array<i32>} : memref<1x3x64x128xf32, #tpu.memory_space<vmem>>, vector<1x1x64x128xf32>,
    return
  }
  func.func @transform_0(%arg0: i32, %arg1: i32) -> (i32, i32, i32) {
    %c0_i32 = arith.constant 0 : i32
    %c0_i32_0 = arith.constant 0 : i32
    return %arg0, %arg1, %c0_i32 : i32, i32, i32
  }
  func.func @transform_1(%arg0: i32, %arg1: i32) -> (i32, i32, i32, i32) {
    %c0_i32 = arith.constant 0 : i32
    %c0_i32_0 = arith.constant 0 : i32
    %c0_i32_1 = arith.constant 0 : i32
    return %arg0, %arg1, %c0_i32, %c0_i32_0 : i32, i32, i32, i32
  }
  func.func @transform_2(%arg0: i32, %arg1: i32) -> (i32, i32, i32, i32) {
    %c0_i32 = arith.constant 0 : i32
    %c0_i32_0 = arith.constant 0 : i32
    %c0_i32_1 = arith.constant 0 : i32
    return %arg0, %c0_i32, %arg1, %c0_i32_0 : i32, i32, i32, i32
  }
  func.func @transform_3(%arg0: i32, %arg1: i32) -> (i32, i32, i32, i32) {
    %c0_i32 = arith.constant 0 : i32
    %c0_i32_0 = arith.constant 0 : i32
    %c0_i32_1 = arith.constant 0 : i32
    return %arg0, %c0_i32, %arg1, %c0_i32_0 : i32, i32, i32, i32
  }
  func.func @transform_4(%arg0: i32, %arg1: i32) -> (i32, i32, i32) {
    %c0_i32 = arith.constant 0 : i32
    %c0_i32_0 = arith.constant 0 : i32
    return %arg0, %arg1, %c0_i32 : i32, i32, i32
  }
}

</mosaic_0001>

<llo_original>
// kernel: tpu_custom_call.1
$region0: #{tpu_custom_call.1}
  #allocation0 [shape = 'u32[]', space=smem, size = 0x4, offset = 0x4, fixed_abs, tag = 'smem constant byte address 0x4 - core index']
  #allocation1 [shape = 'u32[144,128]{1,0:T(1,128)}', space=vmem, size = 0x12000, scoped, tag = 'internal scratch']
  #allocation11 [shape = 's32[]', space=sflag, size = 0x4, offset = 0, fixed_abs, tag = 'sflag constant byte address 0x0 - dummy sync flag']
  #allocation13 [shape = 's32[]', space=sflag, size = 0x4, offset = 0, fixed_abs, tag = 'sflag constant byte address 0x0 - dummy sync flag']
  %s0 = inlined_call_operand.hbm [shape: f32[2,192,128], index: 0, kind: input, shape index: {}]
  %s1 = inlined_call_operand.hbm [shape: f32[2,3,16,128], index: 1, kind: input, shape index: {}]
  %s2 = inlined_call_operand.hbm [shape: f32[2,3,192,128], index: 2, kind: output, shape index: {0}]
  %s3 = inlined_call_operand.hbm [shape: f32[2,3,192,128], index: 3, kind: output, shape index: {1}]
  %s4 = inlined_call_operand.hbm [shape: u8[2,192,128], index: 4, kind: output, shape index: {2}]
  %5 = xla_tuple %s2, %s3, %s4
  %s6 = sld [smem:[#allocation0]]
  $region65: #{tpu_custom_call.1} parent=0
    _
  %s8 = ssub.s32 1, %s6
  %s9 = scalar_select 0, %s8, %s6
  $region1: #{tpu_custom_call.1} parent=0
    #allocation2 [shape = 'u8[65536]{0}', space=vmem, size = 0x10000, scoped, tag = 'input window, operand 0']
    #allocation3 [shape = 's32[2]{0}', space=sflag, size = 0x8, scoped, tag = 'scoped memory for tpu_custom_call.1']
    #allocation4 [shape = 's32[2]{0}', space=sflag, size = 0x8, scoped, tag = 'scoped memory for tpu_custom_call.1']
    #allocation5 [shape = 'u8[16384]{0}', space=vmem, size = 0x4000, scoped, tag = 'input window, operand 1']
    #allocation6 [shape = 's32[2]{0}', space=sflag, size = 0x8, scoped, tag = 'scoped memory for tpu_custom_call.1']
    #allocation7 [shape = 'u8[196608]{0}', space=vmem, size = 0x30000, scoped, tag = 'output window, operand 0']
    #allocation8 [shape = 'u8[196608]{0}', space=vmem, size = 0x30000, scoped, tag = 'output window, operand 1']
    #allocation9 [shape = 's32[2]{0}', space=sflag, size = 0x8, scoped, tag = 'scoped memory for tpu_custom_call.1']
    #allocation10 [shape = 'u8[16384]{0}', space=vmem, size = 0x4000, scoped, tag = 'output window, operand 2']
    %10 = vsyncpa [#allocation3], 0
    %s11 = scalar_lea.sflag [#allocation3], 1
    %12 = vsyncpa %s11, 0
    %13 = vsyncpa [#allocation6], 0
    %s14 = scalar_lea.sflag [#allocation6], 1
    %15 = vsyncpa %s14, 0
    %16 = vsyncpa [#allocation4], 0
    %s17 = scalar_lea.sflag [#allocation4], 1
    %18 = vsyncpa %s17, 0
    %19 = vsyncpa [#allocation9], 0
    %s20 = scalar_lea.sflag [#allocation9], 1
    %21 = vsyncpa %s20, 0
    loop: start=0, step=1, limit=8
    $region2: #{tpu_custom_call.1} parent=1 // loop_pre_header
      _
    $region3: #{tpu_custom_call.1} parent=1 // loop_header
      %s23 = sphi 0, %s27
      %p24 = scmp.ge.s32.totalorder %s23, 8
      %s30 = sphi 0, %s42
      %s31 = sphi 0, %s38
      %s32 = sphi 0, %s30
      %s33 = sphi 0, %s31
      %s34 = sphi 0, %s32
      %s35 = sphi 0, %s33
      %s47 = sphi 0, %s49
      %s50 = sphi 0, %s47
      %s51 = sphi 0, %s50
      %s67 = sphi 0, %s51
      %s75 = sphi 0, %s77
      %s78 = sphi 0, %s75
      %s79 = sphi 0, %s78
      %s95 = sphi 0, %s79
      %s103 = sphi 0, %s105
      %s106 = sphi 0, %s103
      %s107 = sphi 0, %s106
      %s123 = sphi 0, %s107
      %s131 = sphi 0, %s133
      %s134 = sphi 0, %s131
      %s135 = sphi 0, %s134
      %s151 = sphi 0, %s135
      %s159 = sphi 0, %s161
      %s162 = sphi 0, %s159
      %s163 = sphi 0, %s162
      %s179 = sphi 0, %s163
    $region4: #{tpu_custom_call.1} parent=1 // loop_header_branch
      %26 = sbr.rel (%p24) target = $region8
    $region5: #{tpu_custom_call.1} parent=1 // loop_body
      %s28 = ssub.s32 %s23, 1
      %s29 = ssub.s32 %s23, 2
      %s36 = sadd.s32 1, %s31
      %p37 = scmp.ge.s32.totalorder %s36, 3
      %s38 = scalar_select %p37, 0, %s36
      %s39 = sadd.s32 1, %s30
      %s40 = scalar_select %p37, %s39, %s30
      %p41 = scmp.ge.s32.totalorder %s40, 2
      %s42 = scalar_select %p41, 0, %s40
      %s43 = ssub.s32 %s30, %s42
      %s44 = ssub.s32 %s31, %s38
      %s45 = sor.u32 %s43, %s44
      %p46 = scmp.eq.s32.totalorder %s45, 0
      %s48 = sadd.s32 %s47, 1
      %s49 = scalar_select %p46, %s47, %s48
      %p52 = pneg %p46
      %p53 = scmp.eq.s32.totalorder %s23, 5
      %p54 = por %p52, %p53
      %p55 = scmp.ne.s32.totalorder %s47, %s50
      %p56 = scmp.eq.s32.totalorder %s23, 0
      %p57 = por %p55, %p56
      %p58 = scmp.ne.s32.totalorder %s47, %s50
      %p59 = scmp.eq.s32.totalorder %s28, 5
      %p60 = por %p58, %p59
      %p61 = scmp.ne.s32.totalorder %s50, %s51
      %p62 = scmp.eq.s32.totalorder %s28, 0
      %p63 = por %p61, %p62
      %p64 = scmp.ne.s32.totalorder %s50, %s51
      %p65 = scmp.eq.s32.totalorder %s29, 5
      %p66 = por %p64, %p65
      %p68 = scmp.ne.s32.totalorder %s51, %s67
      %p69 = scmp.eq.s32.totalorder %s29, 0
      %p70 = por %p68, %p69
      %s71 = ssub.s32 %s30, %s42
      %s72 = ssub.s32 %s31, %s38
      %s73 = sor.u32 %s71, %s72
      %p74 = scmp.eq.s32.totalorder %s73, 0
      %s76 = sadd.s32 %s75, 1
      %s77 = scalar_select %p74, %s75, %s76
      %p80 = pneg %p74
      %p81 = scmp.eq.s32.totalorder %s23, 5
      %p82 = por %p80, %p81
      %p83 = scmp.ne.s32.totalorder %s75, %s78
      %p84 = scmp.eq.s32.totalorder %s23, 0
      %p85 = por %p83, %p84
      %p86 = scmp.ne.s32.totalorder %s75, %s78
      %p87 = scmp.eq.s32.totalorder %s28, 5
      %p88 = por %p86, %p87
      %p89 = scmp.ne.s32.totalorder %s78, %s79
      %p90 = scmp.eq.s32.totalorder %s28, 0
      %p91 = por %p89, %p90
      %p92 = scmp.ne.s32.totalorder %s78, %s79
      %p93 = scmp.eq.s32.totalorder %s29, 5
      %p94 = por %p92, %p93
      %p96 = scmp.ne.s32.totalorder %s79, %s95
      %p97 = scmp.eq.s32.totalorder %s29, 0
      %p98 = por %p96, %p97
      %s99 = ssub.s32 %s30, %s42
      %s100 = ssub.s32 %s31, %s38
      %s101 = sor.u32 %s99, %s100
      %p102 = scmp.eq.s32.totalorder %s101, 0
      %s104 = sadd.s32 %s103, 1
      %s105 = scalar_select %p102, %s103, %s104
      %p108 = pneg %p102
      %p109 = scmp.eq.s32.totalorder %s23, 5
      %p110 = por %p108, %p109
      %p111 = scmp.ne.s32.totalorder %s103, %s106
      %p112 = scmp.eq.s32.totalorder %s23, 0
      %p113 = por %p111, %p112
      %p114 = scmp.ne.s32.totalorder %s103, %s106
      %p115 = scmp.eq.s32.totalorder %s28, 5
      %p116 = por %p114, %p115
      %p117 = scmp.ne.s32.totalorder %s106, %s107
      %p118 = scmp.eq.s32.totalorder %s28, 0
      %p119 = por %p117, %p118
      %p120 = scmp.ne.s32.totalorder %s106, %s107
      %p121 = scmp.eq.s32.totalorder %s29, 5
      %p122 = por %p120, %p121
      %p124 = scmp.ne.s32.totalorder %s107, %s123
      %p125 = scmp.eq.s32.totalorder %s29, 0
      %p126 = por %p124, %p125
      %s127 = ssub.s32 %s30, %s42
      %s128 = ssub.s32 %s31, %s38
      %s129 = sor.u32 %s127, %s128
      %p130 = scmp.eq.s32.totalorder %s129, 0
      %s132 = sadd.s32 %s131, 1
      %s133 = scalar_select %p130, %s131, %s132
      %p136 = pneg %p130
      %p137 = scmp.eq.s32.totalorder %s23, 5
      %p138 = por %p136, %p137
      %p139 = scmp.ne.s32.totalorder %s131, %s134
      %p140 = scmp.eq.s32.totalorder %s23, 0
      %p141 = por %p139, %p140
      %p142 = scmp.ne.s32.totalorder %s131, %s134
      %p143 = scmp.eq.s32.totalorder %s28, 5
      %p144 = por %p142, %p143
      %p145 = scmp.ne.s32.totalorder %s134, %s135
      %p146 = scmp.eq.s32.totalorder %s28, 0
      %p147 = por %p145, %p146
      %p148 = scmp.ne.s32.totalorder %s134, %s135
      %p149 = scmp.eq.s32.totalorder %s29, 5
      %p150 = por %p148, %p149
      %p152 = scmp.ne.s32.totalorder %s135, %s151
      %p153 = scmp.eq.s32.totalorder %s29, 0
      %p154 = por %p152, %p153
      %s155 = ssub.s32 %s30, %s42
      %s156 = ssub.s32 %s31, %s38
      %s157 = sor.u32 %s155, %s156
      %p158 = scmp.eq.s32.totalorder %s157, 0
      %s160 = sadd.s32 %s159, 1
      %s161 = scalar_select %p158, %s159, %s160
      %p164 = pneg %p158
      %p165 = scmp.eq.s32.totalorder %s23, 5
      %p166 = por %p164, %p165
      %p167 = scmp.ne.s32.totalorder %s159, %s162
      %p168 = scmp.eq.s32.totalorder %s23, 0
      %p169 = por %p167, %p168
      %p170 = scmp.ne.s32.totalorder %s159, %s162
      %p171 = scmp.eq.s32.totalorder %s28, 5
      %p172 = por %p170, %p171
      %p173 = scmp.ne.s32.totalorder %s162, %s163
      %p174 = scmp.eq.s32.totalorder %s28, 0
      %p175 = por %p173, %p174
      %p176 = scmp.ne.s32.totalorder %s162, %s163
      %p177 = scmp.eq.s32.totalorder %s29, 5
      %p178 = por %p176, %p177
      %p180 = scmp.ne.s32.totalorder %s163, %s179
      %p181 = scmp.eq.s32.totalorder %s29, 0
      %p182 = por %p180, %p181
      %p183 = scmp.le.s32.totalorder 1, %s23
      %p184 = scmp.lt.s32.totalorder %s23, 7
      %p185 = pnand %p183, %p184
      %p186 = pneg %p185
      // Predicated region
      $region9: #{tpu_custom_call.1} parent=5 // pred_check
        _
      $region10: #{tpu_custom_call.1} parent=5 // pred_check_branch
        %188 = sbr.rel (%p185) target = $region12
      $region11: #{tpu_custom_call.1} parent=5 // pred_region
        %s189 = ssub.s32 %s23, 1
      $region12: #{tpu_custom_call.1} parent=5 // pred_fallthru
        _
      %p190 = scmp.lt.s32.totalorder %s23, 6
      // Predicated region
      $region13: #{tpu_custom_call.1} parent=5 // pred_check
        %p191 = pneg %p190
      $region14: #{tpu_custom_call.1} parent=5 // pred_check_branch
        %193 = sbr.rel (%p191) target = $region16
      $region15: #{tpu_custom_call.1} parent=5 // pred_region
        // Predicated region
        $region17: #{tpu_custom_call.1} parent=15 // pred_check
          %p194 = pneg %p57
        $region18: #{tpu_custom_call.1} parent=15 // pred_check_branch
          %196 = sbr.rel (%p194) target = $region20
        $region19: #{tpu_custom_call.1} parent=15 // pred_region
          %s197 = sand.u32 %s47, 1
          %s198 = scalar_lea.sflag [#allocation3], %s197
          %s199 = sand.u32 %s47, 1
          %s200 = smul.addr %s199, 64
          %s201 = scalar_lea.vmem [#allocation2], %s200
          %s202 = smul.u32 8, %s31
          %s204 = ssub.s32 1024, 1024
          %205 = vsyncadd %s198, %s204
          %s206 = smul.addr %s30, 24
          %s207 = sadd.s32 %s202, %s206
          %s208 = smul.addr %s207, 128
          %s209 = scalar_lea.hbm %s0, %s208
          %s210 = sshll.u32 %s201, 4
          %s211 = int_to_ptr.vmem [resolvable:$true] %s210
          %216 = dma.hbm_to_vmem [thread:$0]  %s209, 1024, %s211, %s198, 128, 128, 8
        $region20: #{tpu_custom_call.1} parent=15 // pred_fallthru
          _
        // Predicated region
        $region21: #{tpu_custom_call.1} parent=15 // pred_check
          %p217 = pneg %p85
        $region22: #{tpu_custom_call.1} parent=15 // pred_check_branch
          %219 = sbr.rel (%p217) target = $region24
        $region23: #{tpu_custom_call.1} parent=15 // pred_region
          %s220 = sand.u32 %s75, 1
          %s221 = scalar_lea.sflag [#allocation6], %s220
          %s222 = sand.u32 %s75, 1
          %s223 = smul.addr %s222, 16
          %s224 = scalar_lea.vmem [#allocation5], %s223
          %s226 = ssub.s32 256, 256
          %227 = vsyncadd %s221, %s226
          %s228 = smul.addr %s31, 2
          %s229 = smul.addr %s30, 6
          %s230 = sadd.s32 %s228, %s229
          %s231 = smul.addr %s230, 128
          %s232 = scalar_lea.hbm %s1, %s231
          %s233 = sshll.u32 %s224, 4
          %s234 = int_to_ptr.vmem [resolvable:$true] %s233
          %239 = dma.hbm_to_vmem [thread:$0]  %s232, 256, %s234, %s221, 128, 128, 8
        $region24: #{tpu_custom_call.1} parent=15 // pred_fallthru
          _
      $region16: #{tpu_custom_call.1} parent=5 // pred_fallthru
        _
      %p240 = scmp.le.s32.totalorder 1, %s23
      %p241 = scmp.lt.s32.totalorder %s23, 7
      %p242 = pnand %p240, %p241
      %p243 = pneg %p242
      // Predicated region
      $region25: #{tpu_custom_call.1} parent=5 // pred_check
        _
      $region26: #{tpu_custom_call.1} parent=5 // pred_check_branch
        %245 = sbr.rel (%p242) target = $region28
      $region27: #{tpu_custom_call.1} parent=5 // pred_region
        %s246 = ssub.s32 %s23, 1
        %s247 = sand.u32 %s50, 1
        %s248 = scalar_lea.sflag [#allocation3], %s247
        %s249 = sand.u32 %s50, 1
        %s250 = smul.addr %s249, 64
        %s251 = scalar_lea.vmem [#allocation2], %s250
        // Predicated region
        $region29: #{tpu_custom_call.1} parent=27 // pred_check
          %p252 = pneg %p63
        $region30: #{tpu_custom_call.1} parent=27 // pred_check_branch
          %254 = sbr.rel (%p252) target = $region32
        $region31: #{tpu_custom_call.1} parent=27 // pred_region
          %255 = dma.done %s248, 1024
        $region32: #{tpu_custom_call.1} parent=27 // pred_fallthru
          _
        %s256 = sand.u32 %s78, 1
        %s257 = scalar_lea.sflag [#allocation6], %s256
        %s258 = sand.u32 %s78, 1
        %s259 = smul.addr %s258, 16
        %s260 = scalar_lea.vmem [#allocation5], %s259
        // Predicated region
        $region33: #{tpu_custom_call.1} parent=27 // pred_check
          %p261 = pneg %p91
        $region34: #{tpu_custom_call.1} parent=27 // pred_check_branch
          %263 = sbr.rel (%p261) target = $region36
        $region35: #{tpu_custom_call.1} parent=27 // pred_region
          %264 = dma.done %s257, 256
        $region36: #{tpu_custom_call.1} parent=27 // pred_fallthru
          _
        %s265 = sand.u32 %s50, 1
        %s266 = scalar_lea.sflag [#allocation3], %s265
        %s267 = sand.u32 %s50, 1
        %s268 = smul.addr %s267, 64
        %s269 = scalar_lea.vmem [#allocation2], %s268
        %p270 = pneg %p63
        %p271 = pneg %p60
        %s272 = sand.u32 %s78, 1
        %s273 = scalar_lea.sflag [#allocation6], %s272
        %s274 = sand.u32 %s78, 1
        %s275 = smul.addr %s274, 16
        %s276 = scalar_lea.vmem [#allocation5], %s275
        %p277 = pneg %p91
        %p278 = pneg %p88
        %p279 = pneg %p119
        %p280 = pneg %p116
        %s281 = sand.u32 %s106, 1
        %s282 = scalar_lea.sflag [#allocation4], %s281
        %s283 = sand.u32 %s106, 1
        %s284 = smul.addr %s283, 192
        %s285 = scalar_lea.vmem [#allocation7], %s284
        %p286 = pneg %p147
        %p287 = pneg %p144
        %s288 = sand.u32 %s28, 1
        %s289 = scalar_lea.sflag [#allocation9], %s288
        %s290 = sand.u32 %s134, 1
        %s291 = smul.addr %s290, 192
        %s292 = scalar_lea.vmem [#allocation8], %s291
        %p293 = pneg %p175
        %p294 = pneg %p172
        %s295 = sand.u32 %s28, 1
        %s296 = scalar_lea.sflag [#allocation9], %s295
        %s297 = sand.u32 %s162, 1
        %s298 = smul.addr %s297, 16
        %s299 = scalar_lea.vmem [#allocation10], %s298
        %s300 = smul.u32 8, %s33
        %s301 = smul.u32 8, %s33
        %s302 = smul.u32 8, %s33
        %s303 = smul.u32 2, %s33
        %v304 = vld [vmem:[%s260] sm:$0xff]
        %v305 = vld [vmem:[%s260 + $0x8] sm:$0xff]
        %v306 = vld [vmem:[%s251] sm:$0xff]
        %v307 = vld [vmem:[%s251 + $0x8] sm:$0xff]
        %v308 = vld [vmem:[%s251 + $0x10] sm:$0xff]
        %v309 = vld [vmem:[%s251 + $0x18] sm:$0xff]
        %v310 = vld [vmem:[%s251 + $0x20] sm:$0xff]
        %v311 = vld [vmem:[%s251 + $0x28] sm:$0xff]
        %v312 = vld [vmem:[%s251 + $0x30] sm:$0xff]
        %v313 = vld [vmem:[%s251 + $0x38] sm:$0xff]
        %vm314 = vcmp.ne.f32.partialorder %v304, 0.0
        %vm315 = vcmp.ne.f32.partialorder %v306, 0.0
        %vm316 = vcmp.ne.f32.partialorder %v307, 0.0
        %vm317 = vcmp.ne.f32.partialorder %v308, 0.0
        %vm318 = vcmp.ne.f32.partialorder %v309, 0.0
        %vm319 = vcmp.ne.f32.partialorder %v310, 0.0
        %vm320 = vcmp.ne.f32.partialorder %v311, 0.0
        %vm321 = vcmp.ne.f32.partialorder %v312, 0.0
        %vm322 = vcmp.ne.f32.partialorder %v313, 0.0
        %vm323 = vcmp.ne.f32.partialorder %v305, 0.0
        %v324 = vsel %vm314, %v304, -100.0
        %v325 = vsel %vm315, %v306, -100.0
        %v326 = vsel %vm316, %v307, -100.0
        %v327 = vsel %vm317, %v308, -100.0
        %v328 = vsel %vm318, %v309, -100.0
        %v329 = vsel %vm319, %v310, -100.0
        %v330 = vsel %vm320, %v311, -100.0
        %v331 = vsel %vm321, %v312, -100.0
        %v332 = vsel %vm322, %v313, -100.0
        %v333 = vsel %vm323, %v305, -100.0
        %v334 = vlaneseq
        %v335 = vshrl.u32 %v334, 7
        %v336 = vadd.s32 %v335, 8
        %v337 = vadd.s32 %v335, 16
        %v338 = vadd.s32 %v335, 24
        %v339 = vadd.s32 %v335, 32
        %v340 = vadd.s32 %v335, 40
        %v341 = vadd.s32 %v335, 48
        %v342 = vadd.s32 %v335, 56
        %v343 = vadd.s32 %v335, 64
        %v344 = vadd.s32 %v335, 72
        %s345 = smul.u32 %s33, 64
        %s346 = ssub.s32 %s345, 8
        %v347 = vstv %s346
        %v348 = vadd.s32 %v335, %v347
        %v349 = vadd.s32 %v336, %v347
        %v350 = vadd.s32 %v337, %v347
        %v351 = vadd.s32 %v338, %v347
        %v352 = vadd.s32 %v339, %v347
        %v353 = vadd.s32 %v340, %v347
        %v354 = vadd.s32 %v341, %v347
        %v355 = vadd.s32 %v342, %v347
        %v356 = vadd.s32 %v343, %v347
        %v357 = vadd.s32 %v344, %v347
        %v358 = vlaneseq
        %v359 = vand.u32 %v358, 127
        %vm360 = vcmp.lt.s32.totalorder %v359, 19
        %361 = vrot.lane.b32.xlu0 %v324, 127
        %v362 = vpop.permute.xlu0 %361
        %363 = vrot.lane.b32.xlu0 %v325, 127
        %v364 = vpop.permute.xlu0 %363
        %365 = vrot.lane.b32.xlu0 %v326, 127
        %v366 = vpop.permute.xlu0 %365
        %367 = vrot.lane.b32.xlu0 %v327, 127
        %v368 = vpop.permute.xlu0 %367
        %369 = vrot.lane.b32.xlu0 %v328, 127
        %v370 = vpop.permute.xlu0 %369
        %371 = vrot.lane.b32.xlu0 %v329, 127
        %v372 = vpop.permute.xlu0 %371
        %373 = vrot.lane.b32.xlu0 %v330, 127
        %v374 = vpop.permute.xlu0 %373
        %375 = vrot.lane.b32.xlu0 %v331, 127
        %v376 = vpop.permute.xlu0 %375
        %377 = vrot.lane.b32.xlu0 %v332, 127
        %v378 = vpop.permute.xlu0 %377
        %379 = vrot.lane.b32.xlu0 %v333, 127
        %v380 = vpop.permute.xlu0 %379
        %v381 = vsub.f32 %v362, %v324
        %v382 = vsub.f32 %v364, %v325
        %v383 = vsub.f32 %v366, %v326
        %v384 = vsub.f32 %v368, %v327
        %v385 = vsub.f32 %v370, %v328
        %v386 = vsub.f32 %v372, %v329
        %v387 = vsub.f32 %v374, %v330
        %v388 = vsub.f32 %v376, %v331
        %v389 = vsub.f32 %v378, %v332
        %v390 = vsub.f32 %v380, %v333
        %v391 = vsel %vm360, 1, 0
        %vm392 = vcmp.eq.s32.totalorder %v391, 1
        %v393 = vsel %vm392, %v381, 0.0
        %v394 = vsel %vm392, %v382, 0.0
        %v395 = vsel %vm392, %v383, 0.0
        %v396 = vsel %vm392, %v384, 0.0
        %v397 = vsel %vm392, %v385, 0.0
        %v398 = vsel %vm392, %v386, 0.0
        %v399 = vsel %vm392, %v387, 0.0
        %v400 = vsel %vm392, %v388, 0.0
        %v401 = vsel %vm392, %v389, 0.0
        %v402 = vsel %vm392, %v390, 0.0
        %vm403 = vcmp.ge.s32.totalorder %v359, 1
        %404 = vrot.lane.b32.xlu0 %v324, 1
        %v405 = vpop.permute.xlu0 %404
        %406 = vrot.lane.b32.xlu0 %v325, 1
        %v407 = vpop.permute.xlu0 %406
        %408 = vrot.lane.b32.xlu0 %v326, 1
        %v409 = vpop.permute.xlu0 %408
        %410 = vrot.lane.b32.xlu0 %v327, 1
        %v411 = vpop.permute.xlu0 %410
        %412 = vrot.lane.b32.xlu0 %v328, 1
        %v413 = vpop.permute.xlu0 %412
        %414 = vrot.lane.b32.xlu0 %v329, 1
        %v415 = vpop.permute.xlu0 %414
        %416 = vrot.lane.b32.xlu0 %v330, 1
        %v417 = vpop.permute.xlu0 %416
        %418 = vrot.lane.b32.xlu0 %v331, 1
        %v419 = vpop.permute.xlu0 %418
        %420 = vrot.lane.b32.xlu0 %v332, 1
        %v421 = vpop.permute.xlu0 %420
        %422 = vrot.lane.b32.xlu0 %v333, 1
        %v423 = vpop.permute.xlu0 %422
        %v424 = vsub.f32 %v324, %v405
        %v425 = vsub.f32 %v325, %v407
        %v426 = vsub.f32 %v326, %v409
        %v427 = vsub.f32 %v327, %v411
        %v428 = vsub.f32 %v328, %v413
        %v429 = vsub.f32 %v329, %v415
        %v430 = vsub.f32 %v330, %v417
        %v431 = vsub.f32 %v331, %v419
        %v432 = vsub.f32 %v332, %v421
        %v433 = vsub.f32 %v333, %v423
        %v434 = vsel %vm403, 1, 0
        %vm435 = vcmp.eq.s32.totalorder %v434, 1
        %v436 = vsel %vm435, %v424, 0.0
        %v437 = vsel %vm435, %v425, 0.0
        %v438 = vsel %vm435, %v426, 0.0
        %v439 = vsel %vm435, %v427, 0.0
        %v440 = vsel %vm435, %v428, 0.0
        %v441 = vsel %vm435, %v429, 0.0
        %v442 = vsel %vm435, %v430, 0.0
        %v443 = vsel %vm435, %v431, 0.0
        %v444 = vsel %vm435, %v432, 0.0
        %v445 = vsel %vm435, %v433, 0.0
        %vm446 = vcmp.lt.s32.totalorder %v348, 135
        %vm447 = vcmp.lt.s32.totalorder %v349, 135
        %vm448 = vcmp.lt.s32.totalorder %v350, 135
        %vm449 = vcmp.lt.s32.totalorder %v351, 135
        %vm450 = vcmp.lt.s32.totalorder %v352, 135
        %vm451 = vcmp.lt.s32.totalorder %v353, 135
        %vm452 = vcmp.lt.s32.totalorder %v354, 135
        %vm453 = vcmp.lt.s32.totalorder %v355, 135
        %vm454 = vcmp.lt.s32.totalorder %v356, 135
        %vm455 = vcmp.lt.s32.totalorder %v357, 135
        %v456 = vrot.slane %v324, 1
        %v457 = vrot.slane %v325, 1
        %v458 = vrot.slane %v326, 1
        %v459 = vrot.slane %v327, 1
        %v460 = vrot.slane %v328, 1
        %v461 = vrot.slane %v329, 1
        %v462 = vrot.slane %v330, 1
        %v463 = vrot.slane %v331, 1
        %v464 = vrot.slane %v332, 1
        %v465 = vrot.slane %v333, 1
        %vm466 = vcmp.lt.s32.totalorder %v335, 7
        %v467 = vsel %vm466, %v464, %v465
        %v468 = vsel %vm466, %v463, %v464
        %v469 = vsel %vm466, %v462, %v463
        %v470 = vsel %vm466, %v461, %v462
        %v471 = vsel %vm466, %v460, %v461
        %v472 = vsel %vm466, %v459, %v460
        %v473 = vsel %vm466, %v458, %v459
        %v474 = vsel %vm466, %v457, %v458
        %v475 = vsel %vm466, %v456, %v457
        %v476 = vsel %vm466, %v465, %v456
        %v477 = vsub.f32 %v475, %v324
        %v478 = vsub.f32 %v474, %v325
        %v479 = vsub.f32 %v473, %v326
        %v480 = vsub.f32 %v472, %v327
        %v481 = vsub.f32 %v471, %v328
        %v482 = vsub.f32 %v470, %v329
        %v483 = vsub.f32 %v469, %v330
        %v484 = vsub.f32 %v468, %v331
        %v485 = vsub.f32 %v467, %v332
        %v486 = vsub.f32 %v476, %v333
        %v487 = vsel %vm446, 1, 0
        %v488 = vsel %vm447, 1, 0
        %v489 = vsel %vm448, 1, 0
        %v490 = vsel %vm449, 1, 0
        %v491 = vsel %vm450, 1, 0
        %v492 = vsel %vm451, 1, 0
        %v493 = vsel %vm452, 1, 0
        %v494 = vsel %vm453, 1, 0
        %v495 = vsel %vm454, 1, 0
        %v496 = vsel %vm455, 1, 0
        %vm497 = vcmp.eq.s32.totalorder %v487, 1
        %vm498 = vcmp.eq.s32.totalorder %v488, 1
        %vm499 = vcmp.eq.s32.totalorder %v489, 1
        %vm500 = vcmp.eq.s32.totalorder %v490, 1
        %vm501 = vcmp.eq.s32.totalorder %v491, 1
        %vm502 = vcmp.eq.s32.totalorder %v492, 1
        %vm503 = vcmp.eq.s32.totalorder %v493, 1
        %vm504 = vcmp.eq.s32.totalorder %v494, 1
        %vm505 = vcmp.eq.s32.totalorder %v495, 1
        %vm506 = vcmp.eq.s32.totalorder %v496, 1
        %v507 = vsel %vm497, %v477, 0.0
        %v508 = vsel %vm498, %v478, 0.0
        %v509 = vsel %vm499, %v479, 0.0
        %v510 = vsel %vm500, %v480, 0.0
        %v511 = vsel %vm501, %v481, 0.0
        %v512 = vsel %vm502, %v482, 0.0
        %v513 = vsel %vm503, %v483, 0.0
        %v514 = vsel %vm504, %v484, 0.0
        %v515 = vsel %vm505, %v485, 0.0
        %v516 = vsel %vm506, %v486, 0.0
        %vm517 = vcmp.ge.s32.totalorder %v348, 1
        %vm518 = vcmp.ge.s32.totalorder %v349, 1
        %vm519 = vcmp.ge.s32.totalorder %v350, 1
        %vm520 = vcmp.ge.s32.totalorder %v351, 1
        %vm521 = vcmp.ge.s32.totalorder %v352, 1
        %vm522 = vcmp.ge.s32.totalorder %v353, 1
        %vm523 = vcmp.ge.s32.totalorder %v354, 1
        %vm524 = vcmp.ge.s32.totalorder %v355, 1
        %vm525 = vcmp.ge.s32.totalorder %v356, 1
        %vm526 = vcmp.ge.s32.totalorder %v357, 1
        %v527 = vrot.slane %v324, 7
        %v528 = vrot.slane %v325, 7
        %v529 = vrot.slane %v326, 7
        %v530 = vrot.slane %v327, 7
        %v531 = vrot.slane %v328, 7
        %v532 = vrot.slane %v329, 7
        %v533 = vrot.slane %v330, 7
        %v534 = vrot.slane %v331, 7
        %v535 = vrot.slane %v332, 7
        %v536 = vrot.slane %v333, 7
        %vm537 = vcmp.lt.s32.totalorder %v335, 1
        %v538 = vsel %vm537, %v535, %v536
        %v539 = vsel %vm537, %v534, %v535
        %v540 = vsel %vm537, %v533, %v534
        %v541 = vsel %vm537, %v532, %v533
        %v542 = vsel %vm537, %v531, %v532
        %v543 = vsel %vm537, %v530, %v531
        %v544 = vsel %vm537, %v529, %v530
        %v545 = vsel %vm537, %v528, %v529
        %v546 = vsel %vm537, %v527, %v528
        %v547 = vsel %vm537, %v536, %v527
        %v548 = vsub.f32 %v324, %v547
        %v549 = vsub.f32 %v325, %v546
        %v550 = vsub.f32 %v326, %v545
        %v551 = vsub.f32 %v327, %v544
        %v552 = vsub.f32 %v328, %v543
        %v553 = vsub.f32 %v329, %v542
        %v554 = vsub.f32 %v330, %v541
        %v555 = vsub.f32 %v331, %v540
        %v556 = vsub.f32 %v332, %v539
        %v557 = vsub.f32 %v333, %v538
        %v558 = vsel %vm517, 1, 0
        %v559 = vsel %vm518, 1, 0
        %v560 = vsel %vm519, 1, 0
        %v561 = vsel %vm520, 1, 0
        %v562 = vsel %vm521, 1, 0
        %v563 = vsel %vm522, 1, 0
        %v564 = vsel %vm523, 1, 0
        %v565 = vsel %vm524, 1, 0
        %v566 = vsel %vm525, 1, 0
        %v567 = vsel %vm526, 1, 0
        %vm568 = vcmp.eq.s32.totalorder %v558, 1
        %vm569 = vcmp.eq.s32.totalorder %v559, 1
        %vm570 = vcmp.eq.s32.totalorder %v560, 1
        %vm571 = vcmp.eq.s32.totalorder %v561, 1
        %vm572 = vcmp.eq.s32.totalorder %v562, 1
        %vm573 = vcmp.eq.s32.totalorder %v563, 1
        %vm574 = vcmp.eq.s32.totalorder %v564, 1
        %vm575 = vcmp.eq.s32.totalorder %v565, 1
        %vm576 = vcmp.eq.s32.totalorder %v566, 1
        %vm577 = vcmp.eq.s32.totalorder %v567, 1
        %v578 = vsel %vm568, %v548, 0.0
        %v579 = vsel %vm569, %v549, 0.0
        %v580 = vsel %vm570, %v550, 0.0
        %v581 = vsel %vm571, %v551, 0.0
        %v582 = vsel %vm572, %v552, 0.0
        %v583 = vsel %vm573, %v553, 0.0
        %v584 = vsel %vm574, %v554, 0.0
        %v585 = vsel %vm575, %v555, 0.0
        %v586 = vsel %vm576, %v556, 0.0
        %v587 = vsel %vm577, %v557, 0.0
        %v588 = vmul.f32 %v393, %v436
        %v589 = vmul.f32 %v394, %v437
        %v590 = vmul.f32 %v395, %v438
        %v591 = vmul.f32 %v396, %v439
        %v592 = vmul.f32 %v397, %v440
        %v593 = vmul.f32 %v398, %v441
        %v594 = vmul.f32 %v399, %v442
        %v595 = vmul.f32 %v400, %v443
        %v596 = vmul.f32 %v401, %v444
        %v597 = vmul.f32 %v402, %v445
        %vm598 = vcmp.gt.f32.partialorder %v588, 0.0
        %vm599 = vcmp.gt.f32.partialorder %v589, 0.0
        %vm600 = vcmp.gt.f32.partialorder %v590, 0.0
        %vm601 = vcmp.gt.f32.partialorder %v591, 0.0
        %vm602 = vcmp.gt.f32.partialorder %v592, 0.0
        %vm603 = vcmp.gt.f32.partialorder %v593, 0.0
        %vm604 = vcmp.gt.f32.partialorder %v594, 0.0
        %vm605 = vcmp.gt.f32.partialorder %v595, 0.0
        %vm606 = vcmp.gt.f32.partialorder %v596, 0.0
        %vm607 = vcmp.gt.f32.partialorder %v597, 0.0
        %v608 = vand.u32 2147483647, %v393
        %v609 = vand.u32 2147483647, %v394
        %v610 = vand.u32 2147483647, %v395
        %v611 = vand.u32 2147483647, %v396
        %v612 = vand.u32 2147483647, %v397
        %v613 = vand.u32 2147483647, %v398
        %v614 = vand.u32 2147483647, %v399
        %v615 = vand.u32 2147483647, %v400
        %v616 = vand.u32 2147483647, %v401
        %v617 = vand.u32 2147483647, %v402
        %v618 = vand.u32 2147483647, %v436
        %v619 = vand.u32 2147483647, %v437
        %v620 = vand.u32 2147483647, %v438
        %v621 = vand.u32 2147483647, %v439
        %v622 = vand.u32 2147483647, %v440
        %v623 = vand.u32 2147483647, %v441
        %v624 = vand.u32 2147483647, %v442
        %v625 = vand.u32 2147483647, %v443
        %v626 = vand.u32 2147483647, %v444
        %v627 = vand.u32 2147483647, %v445
        %vm628 = vcmp.lt.f32.partialorder %v608, %v618
        %vm629 = vcmp.lt.f32.partialorder %v609, %v619
        %vm630 = vcmp.lt.f32.partialorder %v610, %v620
        %vm631 = vcmp.lt.f32.partialorder %v611, %v621
        %vm632 = vcmp.lt.f32.partialorder %v612, %v622
        %vm633 = vcmp.lt.f32.partialorder %v613, %v623
        %vm634 = vcmp.lt.f32.partialorder %v614, %v624
        %vm635 = vcmp.lt.f32.partialorder %v615, %v625
        %vm636 = vcmp.lt.f32.partialorder %v616, %v626
        %vm637 = vcmp.lt.f32.partialorder %v617, %v627
        %v638 = vsel %vm628, %v393, %v436
        %v639 = vsel %vm629, %v394, %v437
        %v640 = vsel %vm630, %v395, %v438
        %v641 = vsel %vm631, %v396, %v439
        %v642 = vsel %vm632, %v397, %v440
        %v643 = vsel %vm633, %v398, %v441
        %v644 = vsel %vm634, %v399, %v442
        %v645 = vsel %vm635, %v400, %v443
        %v646 = vsel %vm636, %v401, %v444
        %v647 = vsel %vm637, %v402, %v445
        %v648 = vsel %vm598, %v638, 0.0
        %v649 = vsel %vm599, %v639, 0.0
        %v650 = vsel %vm600, %v640, 0.0
        %v651 = vsel %vm601, %v641, 0.0
        %v652 = vsel %vm602, %v642, 0.0
        %v653 = vsel %vm603, %v643, 0.0
        %v654 = vsel %vm604, %v644, 0.0
        %v655 = vsel %vm605, %v645, 0.0
        %v656 = vsel %vm606, %v646, 0.0
        %v657 = vsel %vm607, %v647, 0.0
        %v658 = vmul.f32 %v507, %v578
        %v659 = vmul.f32 %v508, %v579
        %v660 = vmul.f32 %v509, %v580
        %v661 = vmul.f32 %v510, %v581
        %v662 = vmul.f32 %v511, %v582
        %v663 = vmul.f32 %v512, %v583
        %v664 = vmul.f32 %v513, %v584
        %v665 = vmul.f32 %v514, %v585
        %v666 = vmul.f32 %v515, %v586
        %v667 = vmul.f32 %v516, %v587
        %vm668 = vcmp.gt.f32.partialorder %v658, 0.0
        %vm669 = vcmp.gt.f32.partialorder %v659, 0.0
        %vm670 = vcmp.gt.f32.partialorder %v660, 0.0
        %vm671 = vcmp.gt.f32.partialorder %v661, 0.0
        %vm672 = vcmp.gt.f32.partialorder %v662, 0.0
        %vm673 = vcmp.gt.f32.partialorder %v663, 0.0
        %vm674 = vcmp.gt.f32.partialorder %v664, 0.0
        %vm675 = vcmp.gt.f32.partialorder %v665, 0.0
        %vm676 = vcmp.gt.f32.partialorder %v666, 0.0
        %vm677 = vcmp.gt.f32.partialorder %v667, 0.0
        %v678 = vand.u32 2147483647, %v507
        %v679 = vand.u32 2147483647, %v508
        %v680 = vand.u32 2147483647, %v509
        %v681 = vand.u32 2147483647, %v510
        %v682 = vand.u32 2147483647, %v511
        %v683 = vand.u32 2147483647, %v512
        %v684 = vand.u32 2147483647, %v513
        %v685 = vand.u32 2147483647, %v514
        %v686 = vand.u32 2147483647, %v515
        %v687 = vand.u32 2147483647, %v516
        %v688 = vand.u32 2147483647, %v578
        %v689 = vand.u32 2147483647, %v579
        %v690 = vand.u32 2147483647, %v580
        %v691 = vand.u32 2147483647, %v581
        %v692 = vand.u32 2147483647, %v582
        %v693 = vand.u32 2147483647, %v583
        %v694 = vand.u32 2147483647, %v584
        %v695 = vand.u32 2147483647, %v585
        %v696 = vand.u32 2147483647, %v586
        %v697 = vand.u32 2147483647, %v587
        %vm698 = vcmp.lt.f32.partialorder %v678, %v688
        %vm699 = vcmp.lt.f32.partialorder %v679, %v689
        %vm700 = vcmp.lt.f32.partialorder %v680, %v690
        %vm701 = vcmp.lt.f32.partialorder %v681, %v691
        %vm702 = vcmp.lt.f32.partialorder %v682, %v692
        %vm703 = vcmp.lt.f32.partialorder %v683, %v693
        %vm704 = vcmp.lt.f32.partialorder %v684, %v694
        %vm705 = vcmp.lt.f32.partialorder %v685, %v695
        %vm706 = vcmp.lt.f32.partialorder %v686, %v696
        %vm707 = vcmp.lt.f32.partialorder %v687, %v697
        %v708 = vsel %vm698, %v507, %v578
        %v709 = vsel %vm699, %v508, %v579
        %v710 = vsel %vm700, %v509, %v580
        %v711 = vsel %vm701, %v510, %v581
        %v712 = vsel %vm702, %v511, %v582
        %v713 = vsel %vm703, %v512, %v583
        %v714 = vsel %vm704, %v513, %v584
        %v715 = vsel %vm705, %v514, %v585
        %v716 = vsel %vm706, %v515, %v586
        %v717 = vsel %vm707, %v516, %v587
        %v718 = vsel %vm668, %v708, 0.0
        %v719 = vsel %vm669, %v709, 0.0
        %v720 = vsel %vm670, %v710, 0.0
        %v721 = vsel %vm671, %v711, 0.0
        %v722 = vsel %vm672, %v712, 0.0
        %v723 = vsel %vm673, %v713, 0.0
        %v724 = vsel %vm674, %v714, 0.0
        %v725 = vsel %vm675, %v715, 0.0
        %v726 = vsel %vm676, %v716, 0.0
        %v727 = vsel %vm677, %v717, 0.0
        %v728 = vand.u32 2147483647, %v648
        %v729 = vand.u32 2147483647, %v649
        %v730 = vand.u32 2147483647, %v650
        %v731 = vand.u32 2147483647, %v651
        %v732 = vand.u32 2147483647, %v652
        %v733 = vand.u32 2147483647, %v653
        %v734 = vand.u32 2147483647, %v654
        %v735 = vand.u32 2147483647, %v655
        %v736 = vand.u32 2147483647, %v656
        %v737 = vand.u32 2147483647, %v657
        %vm738 = vcmp.gt.f32.partialorder %v728, 10.0
        %vm739 = vcmp.gt.f32.partialorder %v729, 10.0
        %vm740 = vcmp.gt.f32.partialorder %v730, 10.0
        %vm741 = vcmp.gt.f32.partialorder %v731, 10.0
        %vm742 = vcmp.gt.f32.partialorder %v732, 10.0
        %vm743 = vcmp.gt.f32.partialorder %v733, 10.0
        %vm744 = vcmp.gt.f32.partialorder %v734, 10.0
        %vm745 = vcmp.gt.f32.partialorder %v735, 10.0
        %vm746 = vcmp.gt.f32.partialorder %v736, 10.0
        %vm747 = vcmp.gt.f32.partialorder %v737, 10.0
        %v748 = vand.u32 2147483647, %v718
        %v749 = vand.u32 2147483647, %v719
        %v750 = vand.u32 2147483647, %v720
        %v751 = vand.u32 2147483647, %v721
        %v752 = vand.u32 2147483647, %v722
        %v753 = vand.u32 2147483647, %v723
        %v754 = vand.u32 2147483647, %v724
        %v755 = vand.u32 2147483647, %v725
        %v756 = vand.u32 2147483647, %v726
        %v757 = vand.u32 2147483647, %v727
        %vm758 = vcmp.gt.f32.partialorder %v748, 10.0
        %vm759 = vcmp.gt.f32.partialorder %v749, 10.0
        %vm760 = vcmp.gt.f32.partialorder %v750, 10.0
        %vm761 = vcmp.gt.f32.partialorder %v751, 10.0
        %vm762 = vcmp.gt.f32.partialorder %v752, 10.0
        %vm763 = vcmp.gt.f32.partialorder %v753, 10.0
        %vm764 = vcmp.gt.f32.partialorder %v754, 10.0
        %vm765 = vcmp.gt.f32.partialorder %v755, 10.0
        %vm766 = vcmp.gt.f32.partialorder %v756, 10.0
        %vm767 = vcmp.gt.f32.partialorder %v757, 10.0
        %vm768 = vmor %vm738, %vm758
        %vm769 = vmor %vm739, %vm759
        %vm770 = vmor %vm740, %vm760
        %vm771 = vmor %vm741, %vm761
        %vm772 = vmor %vm742, %vm762
        %vm773 = vmor %vm743, %vm763
        %vm774 = vmor %vm744, %vm764
        %vm775 = vmor %vm745, %vm765
        %vm776 = vmor %vm746, %vm766
        %vm777 = vmor %vm747, %vm767
        %v778 = vmul.f32 %v648, %v648
        %v779 = vmul.f32 %v649, %v649
        %v780 = vmul.f32 %v650, %v650
        %v781 = vmul.f32 %v651, %v651
        %v782 = vmul.f32 %v652, %v652
        %v783 = vmul.f32 %v653, %v653
        %v784 = vmul.f32 %v654, %v654
        %v785 = vmul.f32 %v655, %v655
        %v786 = vmul.f32 %v656, %v656
        %v787 = vmul.f32 %v657, %v657
        %v788 = vmul.f32 %v718, %v718
        %v789 = vmul.f32 %v719, %v719
        %v790 = vmul.f32 %v720, %v720
        %v791 = vmul.f32 %v721, %v721
        %v792 = vmul.f32 %v722, %v722
        %v793 = vmul.f32 %v723, %v723
        %v794 = vmul.f32 %v724, %v724
        %v795 = vmul.f32 %v725, %v725
        %v796 = vmul.f32 %v726, %v726
        %v797 = vmul.f32 %v727, %v727
        %v798 = vadd.f32 %v778, %v788
        %v799 = vadd.f32 %v779, %v789
        %v800 = vadd.f32 %v780, %v790
        %v801 = vadd.f32 %v781, %v791
        %v802 = vadd.f32 %v782, %v792
        %v803 = vadd.f32 %v783, %v793
        %v804 = vadd.f32 %v784, %v794
        %v805 = vadd.f32 %v785, %v795
        %v806 = vadd.f32 %v786, %v796
        %v807 = vadd.f32 %v787, %v797
        %v808 = vadd.f32 %v798, 1.000001
        %v809 = vadd.f32 %v799, 1.000001
        %v810 = vadd.f32 %v800, 1.000001
        %v811 = vadd.f32 %v801, 1.000001
        %v812 = vadd.f32 %v802, 1.000001
        %v813 = vadd.f32 %v803, 1.000001
        %v814 = vadd.f32 %v804, 1.000001
        %v815 = vadd.f32 %v805, 1.000001
        %v816 = vadd.f32 %v806, 1.000001
        %v817 = vadd.f32 %v807, 1.000001
        %v818 = vrsqrt.pop %v808
        %v819 = vrsqrt.pop %v809
        %v820 = vrsqrt.pop %v810
        %v821 = vrsqrt.pop %v811
        %v822 = vrsqrt.pop %v812
        %v823 = vrsqrt.pop %v813
        %v824 = vrsqrt.pop %v814
        %v825 = vrsqrt.pop %v815
        %v826 = vrsqrt.pop %v816
        %v827 = vrsqrt.pop %v817
        %vm828 = vmxor %vm768, 1
        %vm829 = vmxor %vm769, 1
        %vm830 = vmxor %vm770, 1
        %vm831 = vmxor %vm771, 1
        %vm832 = vmxor %vm772, 1
        %vm833 = vmxor %vm773, 1
        %vm834 = vmxor %vm774, 1
        %vm835 = vmxor %vm775, 1
        %vm836 = vmxor %vm776, 1
        %vm837 = vmxor %vm777, 1
        %vm838 = vmand %vm314, %vm828
        %vm839 = vmand %vm315, %vm829
        %vm840 = vmand %vm316, %vm830
        %vm841 = vmand %vm317, %vm831
        %vm842 = vmand %vm318, %vm832
        %vm843 = vmand %vm319, %vm833
        %vm844 = vmand %vm320, %vm834
        %vm845 = vmand %vm321, %vm835
        %vm846 = vmand %vm322, %vm836
        %vm847 = vmand %vm323, %vm837
        %vm848 = vcmp.ge.s32.totalorder %v348, 0
        %vm849 = vcmp.ge.s32.totalorder %v349, 0
        %vm850 = vcmp.ge.s32.totalorder %v350, 0
        %vm851 = vcmp.ge.s32.totalorder %v351, 0
        %vm852 = vcmp.ge.s32.totalorder %v352, 0
        %vm853 = vcmp.ge.s32.totalorder %v353, 0
        %vm854 = vcmp.ge.s32.totalorder %v354, 0
        %vm855 = vcmp.ge.s32.totalorder %v355, 0
        %vm856 = vcmp.ge.s32.totalorder %v356, 0
        %vm857 = vcmp.ge.s32.totalorder %v357, 0
        %vm858 = vcmp.lt.s32.totalorder %v348, 136
        %vm859 = vcmp.lt.s32.totalorder %v349, 136
        %vm860 = vcmp.lt.s32.totalorder %v350, 136
        %vm861 = vcmp.lt.s32.totalorder %v351, 136
        %vm862 = vcmp.lt.s32.totalorder %v352, 136
        %vm863 = vcmp.lt.s32.totalorder %v353, 136
        %vm864 = vcmp.lt.s32.totalorder %v354, 136
        %vm865 = vcmp.lt.s32.totalorder %v355, 136
        %vm866 = vcmp.lt.s32.totalorder %v356, 136
        %vm867 = vcmp.lt.s32.totalorder %v357, 136
        %vm868 = vmand %vm848, %vm858
        %vm869 = vmand %vm849, %vm859
        %vm870 = vmand %vm850, %vm860
        %vm871 = vmand %vm851, %vm861
        %vm872 = vmand %vm852, %vm862
        %vm873 = vmand %vm853, %vm863
        %vm874 = vmand %vm854, %vm864
        %vm875 = vmand %vm855, %vm865
        %vm876 = vmand %vm856, %vm866
        %vm877 = vmand %vm857, %vm867
        %v878 = vsel %vm868, 1, 0
        %v879 = vsel %vm869, 1, 0
        %v880 = vsel %vm870, 1, 0
        %v881 = vsel %vm871, 1, 0
        %v882 = vsel %vm872, 1, 0
        %v883 = vsel %vm873, 1, 0
        %v884 = vsel %vm874, 1, 0
        %v885 = vsel %vm875, 1, 0
        %v886 = vsel %vm876, 1, 0
        %v887 = vsel %vm877, 1, 0
        %vm888 = vcmp.eq.s32.totalorder %v878, 1
        %vm889 = vcmp.eq.s32.totalorder %v879, 1
        %vm890 = vcmp.eq.s32.totalorder %v880, 1
        %vm891 = vcmp.eq.s32.totalorder %v881, 1
        %vm892 = vcmp.eq.s32.totalorder %v882, 1
        %vm893 = vcmp.eq.s32.totalorder %v883, 1
        %vm894 = vcmp.eq.s32.totalorder %v884, 1
        %vm895 = vcmp.eq.s32.totalorder %v885, 1
        %vm896 = vcmp.eq.s32.totalorder %v886, 1
        %vm897 = vcmp.eq.s32.totalorder %v887, 1
        %vm898 = vmand %vm838, %vm888
        %vm899 = vmand %vm839, %vm889
        %vm900 = vmand %vm840, %vm890
        %vm901 = vmand %vm841, %vm891
        %vm902 = vmand %vm842, %vm892
        %vm903 = vmand %vm843, %vm893
        %vm904 = vmand %vm844, %vm894
        %vm905 = vmand %vm845, %vm895
        %vm906 = vmand %vm846, %vm896
        %vm907 = vmand %vm847, %vm897
        %vm908 = vcmp.lt.s32.totalorder %v359, 20
        %v909 = vsel %vm908, 1, 0
        %vm910 = vcmp.eq.s32.totalorder %v909, 1
        %vm911 = vmand %vm898, %vm910
        %vm912 = vmand %vm899, %vm910
        %vm913 = vmand %vm900, %vm910
        %vm914 = vmand %vm901, %vm910
        %vm915 = vmand %vm902, %vm910
        %vm916 = vmand %vm903, %vm910
        %vm917 = vmand %vm904, %vm910
        %vm918 = vmand %vm905, %vm910
        %vm919 = vmand %vm906, %vm910
        %vm920 = vmand %vm907, %vm910
        %v921 = vsel %vm912, %v649, 0.0
        %v922 = vsel %vm913, %v650, 0.0
        %v923 = vsel %vm914, %v651, 0.0
        %v924 = vsel %vm915, %v652, 0.0
        %v925 = vsel %vm916, %v653, 0.0
        %v926 = vsel %vm917, %v654, 0.0
        %v927 = vsel %vm918, %v655, 0.0
        %v928 = vsel %vm919, %v656, 0.0
        %929 = vst [vmem:[%s292] sm:$0xff] %v921
        %930 = vst [vmem:[%s292 + $0x8] sm:$0xff] %v922
        %931 = vst [vmem:[%s292 + $0x10] sm:$0xff] %v923
        %932 = vst [vmem:[%s292 + $0x18] sm:$0xff] %v924
        %933 = vst [vmem:[%s292 + $0x20] sm:$0xff] %v925
        %934 = vst [vmem:[%s292 + $0x28] sm:$0xff] %v926
        %935 = vst [vmem:[%s292 + $0x30] sm:$0xff] %v927
        %936 = vst [vmem:[%s292 + $0x38] sm:$0xff] %v928
        %v937 = vsel %vm912, %v719, 0.0
        %v938 = vsel %vm913, %v720, 0.0
        %v939 = vsel %vm914, %v721, 0.0
        %v940 = vsel %vm915, %v722, 0.0
        %v941 = vsel %vm916, %v723, 0.0
        %v942 = vsel %vm917, %v724, 0.0
        %v943 = vsel %vm918, %v725, 0.0
        %v944 = vsel %vm919, %v726, 0.0
        %s945 = scalar_lea.vmem %s292, 64 [#allocation8]
        %946 = vst [vmem:[%s945] sm:$0xff] %v937
        %947 = vst [vmem:[%s945 + $0x8] sm:$0xff] %v938
        %948 = vst [vmem:[%s945 + $0x10] sm:$0xff] %v939
        %949 = vst [vmem:[%s945 + $0x18] sm:$0xff] %v940
        %950 = vst [vmem:[%s945 + $0x20] sm:$0xff] %v941
        %951 = vst [vmem:[%s945 + $0x28] sm:$0xff] %v942
        %952 = vst [vmem:[%s945 + $0x30] sm:$0xff] %v943
        %953 = vst [vmem:[%s945 + $0x38] sm:$0xff] %v944
        %v954 = vsel %vm912, 1, 0
        %v955 = vsel %vm913, 1, 0
        %v956 = vsel %vm914, 1, 0
        %v957 = vsel %vm915, 1, 0
        %v958 = vsel %vm916, 1, 0
        %v959 = vsel %vm917, 1, 0
        %v960 = vsel %vm918, 1, 0
        %v961 = vsel %vm919, 1, 0
        %v962 = vcvt.s32.f32 %v954
        %v963 = vcvt.s32.f32 %v955
        %v964 = vcvt.s32.f32 %v956
        %v965 = vcvt.s32.f32 %v957
        %v966 = vcvt.s32.f32 %v958
        %v967 = vcvt.s32.f32 %v959
        %v968 = vcvt.s32.f32 %v960
        %v969 = vcvt.s32.f32 %v961
        %s970 = scalar_lea.vmem %s292, 128 [#allocation8]
        %971 = vst [vmem:[%s970] sm:$0xff] %v962
        %972 = vst [vmem:[%s970 + $0x8] sm:$0xff] %v963
        %973 = vst [vmem:[%s970 + $0x10] sm:$0xff] %v964
        %974 = vst [vmem:[%s970 + $0x18] sm:$0xff] %v965
        %975 = vst [vmem:[%s970 + $0x20] sm:$0xff] %v966
        %976 = vst [vmem:[%s970 + $0x28] sm:$0xff] %v967
        %977 = vst [vmem:[%s970 + $0x30] sm:$0xff] %v968
        %978 = vst [vmem:[%s970 + $0x38] sm:$0xff] %v969
        %v979 = vsel %vm912, 0, 1
        %v980 = vsel %vm913, 0, 1
        %v981 = vsel %vm914, 0, 1
        %v982 = vsel %vm915, 0, 1
        %v983 = vsel %vm916, 0, 1
        %v984 = vsel %vm917, 0, 1
        %v985 = vsel %vm918, 0, 1
        %v986 = vsel %vm919, 0, 1
        %v987 = vpack.c.b16 %v980, %v979
        %v988 = vpack.c.b16 %v982, %v981
        %v989 = vpack.c.b8 %v988, %v987
        %v990 = vpack.c.b16 %v984, %v983
        %v991 = vpack.c.b16 %v986, %v985
        %v992 = vpack.c.b8 %v991, %v990
        %993 = vst [vmem:[%s299] sm:$0xff] %v989
        %994 = vst [vmem:[%s299 + $0x8] sm:$0xff] %v992
        %v995 = vmul.f32 %v648, %v818
        %v996 = vmul.f32 %v649, %v819
        %v997 = vmul.f32 %v650, %v820
        %v998 = vmul.f32 %v651, %v821
        %v999 = vmul.f32 %v652, %v822
        %v1000 = vmul.f32 %v653, %v823
        %v1001 = vmul.f32 %v654, %v824
        %v1002 = vmul.f32 %v655, %v825
        %v1003 = vmul.f32 %v656, %v826
        %v1004 = vmul.f32 %v657, %v827
        %v1005 = vsel %vm911, %v995, 0.0
        %v1006 = vsel %vm912, %v996, 0.0
        %v1007 = vsel %vm913, %v997, 0.0
        %v1008 = vsel %vm914, %v998, 0.0
        %v1009 = vsel %vm915, %v999, 0.0
        %v1010 = vsel %vm916, %v1000, 0.0
        %v1011 = vsel %vm917, %v1001, 0.0
        %v1012 = vsel %vm918, %v1002, 0.0
        %v1013 = vsel %vm919, %v1003, 0.0
        %v1014 = vsel %vm920, %v1004, 0.0
        %v1015 = vmul.f32 %v718, %v818
        %v1016 = vmul.f32 %v719, %v819
        %v1017 = vmul.f32 %v720, %v820
        %v1018 = vmul.f32 %v721, %v821
        %v1019 = vmul.f32 %v722, %v822
        %v1020 = vmul.f32 %v723, %v823
        %v1021 = vmul.f32 %v724, %v824
        %v1022 = vmul.f32 %v725, %v825
        %v1023 = vmul.f32 %v726, %v826
        %v1024 = vmul.f32 %v727, %v827
        %v1025 = vsel %vm911, %v1015, 0.0
        %v1026 = vsel %vm912, %v1016, 0.0
        %v1027 = vsel %vm913, %v1017, 0.0
        %v1028 = vsel %vm914, %v1018, 0.0
        %v1029 = vsel %vm915, %v1019, 0.0
        %v1030 = vsel %vm916, %v1020, 0.0
        %v1031 = vsel %vm917, %v1021, 0.0
        %v1032 = vsel %vm918, %v1022, 0.0
        %v1033 = vsel %vm919, %v1023, 0.0
        %v1034 = vsel %vm920, %v1024, 0.0
        %v1035 = vsel %vm911, %v818, 0.0
        %v1036 = vsel %vm912, %v819, 0.0
        %v1037 = vsel %vm913, %v820, 0.0
        %v1038 = vsel %vm914, %v821, 0.0
        %v1039 = vsel %vm915, %v822, 0.0
        %v1040 = vsel %vm916, %v823, 0.0
        %v1041 = vsel %vm917, %v824, 0.0
        %v1042 = vsel %vm918, %v825, 0.0
        %v1043 = vsel %vm919, %v826, 0.0
        %v1044 = vsel %vm920, %v827, 0.0
        %v1045 = vrot.slane %v1005, 7
        %v1046 = vrot.slane %v1025, 7
        %v1047 = vrot.slane %v1035, 7
        %v1048 = vrot.slane %v1006, 7
        %v1049 = vrot.slane %v1026, 7
        %v1050 = vrot.slane %v1036, 7
        %v1051 = vrot.slane %v1007, 7
        %v1052 = vrot.slane %v1027, 7
        %v1053 = vrot.slane %v1037, 7
        %v1054 = vrot.slane %v1008, 7
        %v1055 = vrot.slane %v1028, 7
        %v1056 = vrot.slane %v1038, 7
        %v1057 = vrot.slane %v1009, 7
        %v1058 = vrot.slane %v1029, 7
        %v1059 = vrot.slane %v1039, 7
        %v1060 = vrot.slane %v1010, 7
        %v1061 = vrot.slane %v1030, 7
        %v1062 = vrot.slane %v1040, 7
        %v1063 = vrot.slane %v1011, 7
        %v1064 = vrot.slane %v1031, 7
        %v1065 = vrot.slane %v1041, 7
        %v1066 = vrot.slane %v1012, 7
        %v1067 = vrot.slane %v1032, 7
        %v1068 = vrot.slane %v1042, 7
        %v1069 = vrot.slane %v1013, 7
        %v1070 = vrot.slane %v1033, 7
        %v1071 = vrot.slane %v1043, 7
        %v1072 = vsel %vm537, %v1066, %v1069
        %v1073 = vsel %vm537, %v1067, %v1070
        %v1074 = vsel %vm537, %v1068, %v1071
        %v1075 = vsel %vm537, %v1063, %v1066
        %v1076 = vsel %vm537, %v1064, %v1067
        %v1077 = vsel %vm537, %v1065, %v1068
        %v1078 = vsel %vm537, %v1060, %v1063
        %v1079 = vsel %vm537, %v1061, %v1064
        %v1080 = vsel %vm537, %v1062, %v1065
        %v1081 = vsel %vm537, %v1057, %v1060
        %v1082 = vsel %vm537, %v1058, %v1061
        %v1083 = vsel %vm537, %v1059, %v1062
        %v1084 = vsel %vm537, %v1054, %v1057
        %v1085 = vsel %vm537, %v1055, %v1058
        %v1086 = vsel %vm537, %v1056, %v1059
        %v1087 = vsel %vm537, %v1051, %v1054
        %v1088 = vsel %vm537, %v1052, %v1055
        %v1089 = vsel %vm537, %v1053, %v1056
        %v1090 = vsel %vm537, %v1048, %v1051
        %v1091 = vsel %vm537, %v1049, %v1052
        %v1092 = vsel %vm537, %v1050, %v1053
        %v1093 = vsel %vm537, %v1045, %v1048
        %v1094 = vsel %vm537, %v1046, %v1049
        %v1095 = vsel %vm537, %v1047, %v1050
        %v1096 = vadd.f32 %v1006, %v1093
        %v1097 = vadd.f32 %v1026, %v1094
        %v1098 = vadd.f32 %v1036, %v1095
        %v1099 = vadd.f32 %v1007, %v1090
        %v1100 = vadd.f32 %v1027, %v1091
        %v1101 = vadd.f32 %v1037, %v1092
        %v1102 = vadd.f32 %v1008, %v1087
        %v1103 = vadd.f32 %v1028, %v1088
        %v1104 = vadd.f32 %v1038, %v1089
        %v1105 = vadd.f32 %v1009, %v1084
        %v1106 = vadd.f32 %v1029, %v1085
        %v1107 = vadd.f32 %v1039, %v1086
        %v1108 = vadd.f32 %v1010, %v1081
        %v1109 = vadd.f32 %v1030, %v1082
        %v1110 = vadd.f32 %v1040, %v1083
        %v1111 = vadd.f32 %v1011, %v1078
        %v1112 = vadd.f32 %v1031, %v1079
        %v1113 = vadd.f32 %v1041, %v1080
        %v1114 = vadd.f32 %v1012, %v1075
        %v1115 = vadd.f32 %v1032, %v1076
        %v1116 = vadd.f32 %v1042, %v1077
        %v1117 = vadd.f32 %v1013, %v1072
        %v1118 = vadd.f32 %v1033, %v1073
        %v1119 = vadd.f32 %v1043, %v1074
        %v1120 = vrot.slane %v1006, 1
        %v1121 = vrot.slane %v1026, 1
        %v1122 = vrot.slane %v1036, 1
        %v1123 = vrot.slane %v1007, 1
        %v1124 = vrot.slane %v1027, 1
        %v1125 = vrot.slane %v1037, 1
        %v1126 = vrot.slane %v1008, 1
        %v1127 = vrot.slane %v1028, 1
        %v1128 = vrot.slane %v1038, 1
        %v1129 = vrot.slane %v1009, 1
        %v1130 = vrot.slane %v1029, 1
        %v1131 = vrot.slane %v1039, 1
        %v1132 = vrot.slane %v1010, 1
        %v1133 = vrot.slane %v1030, 1
        %v1134 = vrot.slane %v1040, 1
        %v1135 = vrot.slane %v1011, 1
        %v1136 = vrot.slane %v1031, 1
        %v1137 = vrot.slane %v1041, 1
        %v1138 = vrot.slane %v1012, 1
        %v1139 = vrot.slane %v1032, 1
        %v1140 = vrot.slane %v1042, 1
        %v1141 = vrot.slane %v1013, 1
        %v1142 = vrot.slane %v1033, 1
        %v1143 = vrot.slane %v1043, 1
        %v1144 = vrot.slane %v1014, 1
        %v1145 = vrot.slane %v1034, 1
        %v1146 = vrot.slane %v1044, 1
        %v1147 = vsel %vm466, %v1141, %v1144
        %v1148 = vsel %vm466, %v1142, %v1145
        %v1149 = vsel %vm466, %v1143, %v1146
        %v1150 = vsel %vm466, %v1138, %v1141
        %v1151 = vsel %vm466, %v1139, %v1142
        %v1152 = vsel %vm466, %v1140, %v1143
        %v1153 = vsel %vm466, %v1135, %v1138
        %v1154 = vsel %vm466, %v1136, %v1139
        %v1155 = vsel %vm466, %v1137, %v1140
        %v1156 = vsel %vm466, %v1132, %v1135
        %v1157 = vsel %vm466, %v1133, %v1136
        %v1158 = vsel %vm466, %v1134, %v1137
        %v1159 = vsel %vm466, %v1129, %v1132
        %v1160 = vsel %vm466, %v1130, %v1133
        %v1161 = vsel %vm466, %v1131, %v1134
        %v1162 = vsel %vm466, %v1126, %v1129
        %v1163 = vsel %vm466, %v1127, %v1130
        %v1164 = vsel %vm466, %v1128, %v1131
        %v1165 = vsel %vm466, %v1123, %v1126
        %v1166 = vsel %vm466, %v1124, %v1127
        %v1167 = vsel %vm466, %v1125, %v1128
        %v1168 = vsel %vm466, %v1120, %v1123
        %v1169 = vsel %vm466, %v1121, %v1124
        %v1170 = vsel %vm466, %v1122, %v1125
        %v1171 = vadd.f32 %v1096, %v1168
        %v1172 = vadd.f32 %v1097, %v1169
        %v1173 = vadd.f32 %v1098, %v1170
        %v1174 = vadd.f32 %v1099, %v1165
        %v1175 = vadd.f32 %v1100, %v1166
        %v1176 = vadd.f32 %v1101, %v1167
        %v1177 = vadd.f32 %v1102, %v1162
        %v1178 = vadd.f32 %v1103, %v1163
        %v1179 = vadd.f32 %v1104, %v1164
        %v1180 = vadd.f32 %v1105, %v1159
        %v1181 = vadd.f32 %v1106, %v1160
        %v1182 = vadd.f32 %v1107, %v1161
        %v1183 = vadd.f32 %v1108, %v1156
        %v1184 = vadd.f32 %v1109, %v1157
        %v1185 = vadd.f32 %v1110, %v1158
        %v1186 = vadd.f32 %v1111, %v1153
        %v1187 = vadd.f32 %v1112, %v1154
        %v1188 = vadd.f32 %v1113, %v1155
        %v1189 = vadd.f32 %v1114, %v1150
        %v1190 = vadd.f32 %v1115, %v1151
        %v1191 = vadd.f32 %v1116, %v1152
        %v1192 = vadd.f32 %v1117, %v1147
        %v1193 = vadd.f32 %v1118, %v1148
        %v1194 = vadd.f32 %v1119, %v1149
        %v1195 = vrot.slane %v1005, 6
        %v1196 = vrot.slane %v1025, 6
        %v1197 = vrot.slane %v1035, 6
        %v1198 = vrot.slane %v1006, 6
        %v1199 = vrot.slane %v1026, 6
        %v1200 = vrot.slane %v1036, 6
        %v1201 = vrot.slane %v1007, 6
        %v1202 = vrot.slane %v1027, 6
        %v1203 = vrot.slane %v1037, 6
        %v1204 = vrot.slane %v1008, 6
        %v1205 = vrot.slane %v1028, 6
        %v1206 = vrot.slane %v1038, 6
        %v1207 = vrot.slane %v1009, 6
        %v1208 = vrot.slane %v1029, 6
        %v1209 = vrot.slane %v1039, 6
        %v1210 = vrot.slane %v1010, 6
        %v1211 = vrot.slane %v1030, 6
        %v1212 = vrot.slane %v1040, 6
        %v1213 = vrot.slane %v1011, 6
        %v1214 = vrot.slane %v1031, 6
        %v1215 = vrot.slane %v1041, 6
        %v1216 = vrot.slane %v1012, 6
        %v1217 = vrot.slane %v1032, 6
        %v1218 = vrot.slane %v1042, 6
        %v1219 = vrot.slane %v1013, 6
        %v1220 = vrot.slane %v1033, 6
        %v1221 = vrot.slane %v1043, 6
        %vm1222 = vcmp.lt.s32.totalorder %v335, 2
        %v1223 = vsel %vm1222, %v1216, %v1219
        %v1224 = vsel %vm1222, %v1217, %v1220
        %v1225 = vsel %vm1222, %v1218, %v1221
        %v1226 = vsel %vm1222, %v1213, %v1216
        %v1227 = vsel %vm1222, %v1214, %v1217
        %v1228 = vsel %vm1222, %v1215, %v1218
        %v1229 = vsel %vm1222, %v1210, %v1213
        %v1230 = vsel %vm1222, %v1211, %v1214
        %v1231 = vsel %vm1222, %v1212, %v1215
        %v1232 = vsel %vm1222, %v1207, %v1210
        %v1233 = vsel %vm1222, %v1208, %v1211
        %v1234 = vsel %vm1222, %v1209, %v1212
        %v1235 = vsel %vm1222, %v1204, %v1207
        %v1236 = vsel %vm1222, %v1205, %v1208
        %v1237 = vsel %vm1222, %v1206, %v1209
        %v1238 = vsel %vm1222, %v1201, %v1204
        %v1239 = vsel %vm1222, %v1202, %v1205
        %v1240 = vsel %vm1222, %v1203, %v1206
        %v1241 = vsel %vm1222, %v1198, %v1201
        %v1242 = vsel %vm1222, %v1199, %v1202
        %v1243 = vsel %vm1222, %v1200, %v1203
        %v1244 = vsel %vm1222, %v1195, %v1198
        %v1245 = vsel %vm1222, %v1196, %v1199
        %v1246 = vsel %vm1222, %v1197, %v1200
        %v1247 = vadd.f32 %v1171, %v1244
        %v1248 = vadd.f32 %v1172, %v1245
        %v1249 = vadd.f32 %v1173, %v1246
        %v1250 = vadd.f32 %v1174, %v1241
        %v1251 = vadd.f32 %v1175, %v1242
        %v1252 = vadd.f32 %v1176, %v1243
        %v1253 = vadd.f32 %v1177, %v1238
        %v1254 = vadd.f32 %v1178, %v1239
        %v1255 = vadd.f32 %v1179, %v1240
        %v1256 = vadd.f32 %v1180, %v1235
        %v1257 = vadd.f32 %v1181, %v1236
        %v1258 = vadd.f32 %v1182, %v1237
        %v1259 = vadd.f32 %v1183, %v1232
        %v1260 = vadd.f32 %v1184, %v1233
        %v1261 = vadd.f32 %v1185, %v1234
        %v1262 = vadd.f32 %v1186, %v1229
        %v1263 = vadd.f32 %v1187, %v1230
        %v1264 = vadd.f32 %v1188, %v1231
        %v1265 = vadd.f32 %v1189, %v1226
        %v1266 = vadd.f32 %v1190, %v1227
        %v1267 = vadd.f32 %v1191, %v1228
        %v1268 = vadd.f32 %v1192, %v1223
        %v1269 = vadd.f32 %v1193, %v1224
        %v1270 = vadd.f32 %v1194, %v1225
        %v1271 = vrot.slane %v1006, 2
        %v1272 = vrot.slane %v1026, 2
        %v1273 = vrot.slane %v1036, 2
        %v1274 = vrot.slane %v1007, 2
        %v1275 = vrot.slane %v1027, 2
        %v1276 = vrot.slane %v1037, 2
        %v1277 = vrot.slane %v1008, 2
        %v1278 = vrot.slane %v1028, 2
        %v1279 = vrot.slane %v1038, 2
        %v1280 = vrot.slane %v1009, 2
        %v1281 = vrot.slane %v1029, 2
        %v1282 = vrot.slane %v1039, 2
        %v1283 = vrot.slane %v1010, 2
        %v1284 = vrot.slane %v1030, 2
        %v1285 = vrot.slane %v1040, 2
        %v1286 = vrot.slane %v1011, 2
        %v1287 = vrot.slane %v1031, 2
        %v1288 = vrot.slane %v1041, 2
        %v1289 = vrot.slane %v1012, 2
        %v1290 = vrot.slane %v1032, 2
        %v1291 = vrot.slane %v1042, 2
        %v1292 = vrot.slane %v1013, 2
        %v1293 = vrot.slane %v1033, 2
        %v1294 = vrot.slane %v1043, 2
        %v1295 = vrot.slane %v1014, 2
        %v1296 = vrot.slane %v1034, 2
        %v1297 = vrot.slane %v1044, 2
        %vm1298 = vcmp.lt.s32.totalorder %v335, 6
        %v1299 = vsel %vm1298, %v1292, %v1295
        %v1300 = vsel %vm1298, %v1293, %v1296
        %v1301 = vsel %vm1298, %v1294, %v1297
        %v1302 = vsel %vm1298, %v1289, %v1292
        %v1303 = vsel %vm1298, %v1290, %v1293
        %v1304 = vsel %vm1298, %v1291, %v1294
        %v1305 = vsel %vm1298, %v1286, %v1289
        %v1306 = vsel %vm1298, %v1287, %v1290
        %v1307 = vsel %vm1298, %v1288, %v1291
        %v1308 = vsel %vm1298, %v1283, %v1286
        %v1309 = vsel %vm1298, %v1284, %v1287
        %v1310 = vsel %vm1298, %v1285, %v1288
        %v1311 = vsel %vm1298, %v1280, %v1283
        %v1312 = vsel %vm1298, %v1281, %v1284
        %v1313 = vsel %vm1298, %v1282, %v1285
        %v1314 = vsel %vm1298, %v1277, %v1280
        %v1315 = vsel %vm1298, %v1278, %v1281
        %v1316 = vsel %vm1298, %v1279, %v1282
        %v1317 = vsel %vm1298, %v1274, %v1277
        %v1318 = vsel %vm1298, %v1275, %v1278
        %v1319 = vsel %vm1298, %v1276, %v1279
        %v1320 = vsel %vm1298, %v1271, %v1274
        %v1321 = vsel %vm1298, %v1272, %v1275
        %v1322 = vsel %vm1298, %v1273, %v1276
        %v1323 = vadd.f32 %v1247, %v1320
        %v1324 = vadd.f32 %v1248, %v1321
        %v1325 = vadd.f32 %v1249, %v1322
        %v1326 = vadd.f32 %v1250, %v1317
        %v1327 = vadd.f32 %v1251, %v1318
        %v1328 = vadd.f32 %v1252, %v1319
        %v1329 = vadd.f32 %v1253, %v1314
        %v1330 = vadd.f32 %v1254, %v1315
        %v1331 = vadd.f32 %v1255, %v1316
        %v1332 = vadd.f32 %v1256, %v1311
        %v1333 = vadd.f32 %v1257, %v1312
        %v1334 = vadd.f32 %v1258, %v1313
        %v1335 = vadd.f32 %v1259, %v1308
        %v1336 = vadd.f32 %v1260, %v1309
        %v1337 = vadd.f32 %v1261, %v1310
        %v1338 = vadd.f32 %v1262, %v1305
        %v1339 = vadd.f32 %v1263, %v1306
        %v1340 = vadd.f32 %v1264, %v1307
        %v1341 = vadd.f32 %v1265, %v1302
        %v1342 = vadd.f32 %v1266, %v1303
        %v1343 = vadd.f32 %v1267, %v1304
        %v1344 = vadd.f32 %v1268, %v1299
        %v1345 = vadd.f32 %v1269, %v1300
        %v1346 = vadd.f32 %v1270, %v1301
        %1347 = vrot.lane.b32.xlu0 %v1323, 1
        %v1348 = vpop.permute.xlu0 %1347
        %1349 = vrot.lane.b32.xlu0 %v1326, 1
        %v1350 = vpop.permute.xlu0 %1349
        %1351 = vrot.lane.b32.xlu0 %v1329, 1
        %v1352 = vpop.permute.xlu0 %1351
        %1353 = vrot.lane.b32.xlu0 %v1332, 1
        %v1354 = vpop.permute.xlu0 %1353
        %1355 = vrot.lane.b32.xlu0 %v1335, 1
        %v1356 = vpop.permute.xlu0 %1355
        %1357 = vrot.lane.b32.xlu0 %v1338, 1
        %v1358 = vpop.permute.xlu0 %1357
        %1359 = vrot.lane.b32.xlu0 %v1341, 1
        %v1360 = vpop.permute.xlu0 %1359
        %1361 = vrot.lane.b32.xlu0 %v1344, 1
        %v1362 = vpop.permute.xlu0 %1361
        %1363 = vrot.lane.b32.xlu0 %v1324, 1
        %v1364 = vpop.permute.xlu0 %1363
        %1365 = vrot.lane.b32.xlu0 %v1327, 1
        %v1366 = vpop.permute.xlu0 %1365
        %1367 = vrot.lane.b32.xlu0 %v1330, 1
        %v1368 = vpop.permute.xlu0 %1367
        %1369 = vrot.lane.b32.xlu0 %v1333, 1
        %v1370 = vpop.permute.xlu0 %1369
        %1371 = vrot.lane.b32.xlu0 %v1336, 1
        %v1372 = vpop.permute.xlu0 %1371
        %1373 = vrot.lane.b32.xlu0 %v1339, 1
        %v1374 = vpop.permute.xlu0 %1373
        %1375 = vrot.lane.b32.xlu0 %v1342, 1
        %v1376 = vpop.permute.xlu0 %1375
        %1377 = vrot.lane.b32.xlu0 %v1345, 1
        %v1378 = vpop.permute.xlu0 %1377
        %1379 = vrot.lane.b32.xlu0 %v1325, 1
        %v1380 = vpop.permute.xlu0 %1379
        %1381 = vrot.lane.b32.xlu0 %v1328, 1
        %v1382 = vpop.permute.xlu0 %1381
        %1383 = vrot.lane.b32.xlu0 %v1331, 1
        %v1384 = vpop.permute.xlu0 %1383
        %1385 = vrot.lane.b32.xlu0 %v1334, 1
        %v1386 = vpop.permute.xlu0 %1385
        %1387 = vrot.lane.b32.xlu0 %v1337, 1
        %v1388 = vpop.permute.xlu0 %1387
        %1389 = vrot.lane.b32.xlu0 %v1340, 1
        %v1390 = vpop.permute.xlu0 %1389
        %1391 = vrot.lane.b32.xlu0 %v1343, 1
        %v1392 = vpop.permute.xlu0 %1391
        %1393 = vrot.lane.b32.xlu0 %v1346, 1
        %v1394 = vpop.permute.xlu0 %1393
        %vm1395 = vcmp.lt.s32.totalorder %v359, 1
        %v1396 = vsel %vm1395, %v1364, %v1380
        %v1397 = vsel %vm1395, %v1366, %v1382
        %v1398 = vsel %vm1395, %v1368, %v1384
        %v1399 = vsel %vm1395, %v1370, %v1386
        %v1400 = vsel %vm1395, %v1372, %v1388
        %v1401 = vsel %vm1395, %v1374, %v1390
        %v1402 = vsel %vm1395, %v1376, %v1392
        %v1403 = vsel %vm1395, %v1378, %v1394
        %v1404 = vsel %vm1395, %v1348, %v1364
        %v1405 = vsel %vm1395, %v1350, %v1366
        %v1406 = vsel %vm1395, %v1352, %v1368
        %v1407 = vsel %vm1395, %v1354, %v1370
        %v1408 = vsel %vm1395, %v1356, %v1372
        %v1409 = vsel %vm1395, %v1358, %v1374
        %v1410 = vsel %vm1395, %v1360, %v1376
        %v1411 = vsel %vm1395, %v1362, %v1378
        %v1412 = vsel %vm1395, %v1380, %v1348
        %v1413 = vsel %vm1395, %v1382, %v1350
        %v1414 = vsel %vm1395, %v1384, %v1352
        %v1415 = vsel %vm1395, %v1386, %v1354
        %v1416 = vsel %vm1395, %v1388, %v1356
        %v1417 = vsel %vm1395, %v1390, %v1358
        %v1418 = vsel %vm1395, %v1392, %v1360
        %v1419 = vsel %vm1395, %v1394, %v1362
        %1420 = vrot.lane.b32.xlu0 %v1323, 127
        %v1421 = vpop.permute.xlu0 %1420
        %1422 = vrot.lane.b32.xlu0 %v1326, 127
        %v1423 = vpop.permute.xlu0 %1422
        %1424 = vrot.lane.b32.xlu0 %v1329, 127
        %v1425 = vpop.permute.xlu0 %1424
        %1426 = vrot.lane.b32.xlu0 %v1332, 127
        %v1427 = vpop.permute.xlu0 %1426
        %1428 = vrot.lane.b32.xlu0 %v1335, 127
        %v1429 = vpop.permute.xlu0 %1428
        %1430 = vrot.lane.b32.xlu0 %v1338, 127
        %v1431 = vpop.permute.xlu0 %1430
        %1432 = vrot.lane.b32.xlu0 %v1341, 127
        %v1433 = vpop.permute.xlu0 %1432
        %1434 = vrot.lane.b32.xlu0 %v1344, 127
        %v1435 = vpop.permute.xlu0 %1434
        %1436 = vrot.lane.b32.xlu0 %v1324, 127
        %v1437 = vpop.permute.xlu0 %1436
        %1438 = vrot.lane.b32.xlu0 %v1327, 127
        %v1439 = vpop.permute.xlu0 %1438
        %1440 = vrot.lane.b32.xlu0 %v1330, 127
        %v1441 = vpop.permute.xlu0 %1440
        %1442 = vrot.lane.b32.xlu0 %v1333, 127
        %v1443 = vpop.permute.xlu0 %1442
        %1444 = vrot.lane.b32.xlu0 %v1336, 127
        %v1445 = vpop.permute.xlu0 %1444
        %1446 = vrot.lane.b32.xlu0 %v1339, 127
        %v1447 = vpop.permute.xlu0 %1446
        %1448 = vrot.lane.b32.xlu0 %v1342, 127
        %v1449 = vpop.permute.xlu0 %1448
        %1450 = vrot.lane.b32.xlu0 %v1345, 127
        %v1451 = vpop.permute.xlu0 %1450
        %1452 = vrot.lane.b32.xlu0 %v1325, 127
        %v1453 = vpop.permute.xlu0 %1452
        %1454 = vrot.lane.b32.xlu0 %v1328, 127
        %v1455 = vpop.permute.xlu0 %1454
        %1456 = vrot.lane.b32.xlu0 %v1331, 127
        %v1457 = vpop.permute.xlu0 %1456
        %1458 = vrot.lane.b32.xlu0 %v1334, 127
        %v1459 = vpop.permute.xlu0 %1458
        %1460 = vrot.lane.b32.xlu0 %v1337, 127
        %v1461 = vpop.permute.xlu0 %1460
        %1462 = vrot.lane.b32.xlu0 %v1340, 127
        %v1463 = vpop.permute.xlu0 %1462
        %1464 = vrot.lane.b32.xlu0 %v1343, 127
        %v1465 = vpop.permute.xlu0 %1464
        %1466 = vrot.lane.b32.xlu0 %v1346, 127
        %v1467 = vpop.permute.xlu0 %1466
        %vm1468 = vcmp.lt.s32.totalorder %v359, 127
        %v1469 = vsel %vm1468, %v1437, %v1453
        %v1470 = vsel %vm1468, %v1439, %v1455
        %v1471 = vsel %vm1468, %v1441, %v1457
        %v1472 = vsel %vm1468, %v1443, %v1459
        %v1473 = vsel %vm1468, %v1445, %v1461
        %v1474 = vsel %vm1468, %v1447, %v1463
        %v1475 = vsel %vm1468, %v1449, %v1465
        %v1476 = vsel %vm1468, %v1451, %v1467
        %v1477 = vsel %vm1468, %v1421, %v1437
        %v1478 = vsel %vm1468, %v1423, %v1439
        %v1479 = vsel %vm1468, %v1425, %v1441
        %v1480 = vsel %vm1468, %v1427, %v1443
        %v1481 = vsel %vm1468, %v1429, %v1445
        %v1482 = vsel %vm1468, %v1431, %v1447
        %v1483 = vsel %vm1468, %v1433, %v1449
        %v1484 = vsel %vm1468, %v1435, %v1451
        %v1485 = vsel %vm1468, %v1453, %v1421
        %v1486 = vsel %vm1468, %v1455, %v1423
        %v1487 = vsel %vm1468, %v1457, %v1425
        %v1488 = vsel %vm1468, %v1459, %v1427
        %v1489 = vsel %vm1468, %v1461, %v1429
        %v1490 = vsel %vm1468, %v1463, %v1431
        %v1491 = vsel %vm1468, %v1465, %v1433
        %v1492 = vsel %vm1468, %v1467, %v1435
        %v1493 = vadd.f32 %v1323, %v1412
        %v1494 = vadd.f32 %v1324, %v1404
        %v1495 = vadd.f32 %v1325, %v1396
        %v1496 = vadd.f32 %v1326, %v1413
        %v1497 = vadd.f32 %v1327, %v1405
        %v1498 = vadd.f32 %v1328, %v1397
        %v1499 = vadd.f32 %v1329, %v1414
        %v1500 = vadd.f32 %v1330, %v1406
        %v1501 = vadd.f32 %v1331, %v1398
        %v1502 = vadd.f32 %v1332, %v1415
        %v1503 = vadd.f32 %v1333, %v1407
        %v1504 = vadd.f32 %v1334, %v1399
        %v1505 = vadd.f32 %v1335, %v1416
        %v1506 = vadd.f32 %v1336, %v1408
        %v1507 = vadd.f32 %v1337, %v1400
        %v1508 = vadd.f32 %v1338, %v1417
        %v1509 = vadd.f32 %v1339, %v1409
        %v1510 = vadd.f32 %v1340, %v1401
        %v1511 = vadd.f32 %v1341, %v1418
        %v1512 = vadd.f32 %v1342, %v1410
        %v1513 = vadd.f32 %v1343, %v1402
        %v1514 = vadd.f32 %v1344, %v1419
        %v1515 = vadd.f32 %v1345, %v1411
        %v1516 = vadd.f32 %v1346, %v1403
        %v1517 = vadd.f32 %v1493, %v1477
        %v1518 = vadd.f32 %v1494, %v1469
        %v1519 = vadd.f32 %v1495, %v1485
        %v1520 = vadd.f32 %v1496, %v1478
        %v1521 = vadd.f32 %v1497, %v1470
        %v1522 = vadd.f32 %v1498, %v1486
        %v1523 = vadd.f32 %v1499, %v1479
        %v1524 = vadd.f32 %v1500, %v1471
        %v1525 = vadd.f32 %v1501, %v1487
        %v1526 = vadd.f32 %v1502, %v1480
        %v1527 = vadd.f32 %v1503, %v1472
        %v1528 = vadd.f32 %v1504, %v1488
        %v1529 = vadd.f32 %v1505, %v1481
        %v1530 = vadd.f32 %v1506, %v1473
        %v1531 = vadd.f32 %v1507, %v1489
        %v1532 = vadd.f32 %v1508, %v1482
        %v1533 = vadd.f32 %v1509, %v1474
        %v1534 = vadd.f32 %v1510, %v1490
        %v1535 = vadd.f32 %v1511, %v1483
        %v1536 = vadd.f32 %v1512, %v1475
        %v1537 = vadd.f32 %v1513, %v1491
        %v1538 = vadd.f32 %v1514, %v1484
        %v1539 = vadd.f32 %v1515, %v1476
        %v1540 = vadd.f32 %v1516, %v1492
        %1541 = vrot.lane.b32.xlu0 %v1323, 2
        %v1542 = vpop.permute.xlu0 %1541
        %1543 = vrot.lane.b32.xlu0 %v1326, 2
        %v1544 = vpop.permute.xlu0 %1543
        %1545 = vrot.lane.b32.xlu0 %v1329, 2
        %v1546 = vpop.permute.xlu0 %1545
        %1547 = vrot.lane.b32.xlu0 %v1332, 2
        %v1548 = vpop.permute.xlu0 %1547
        %1549 = vrot.lane.b32.xlu0 %v1335, 2
        %v1550 = vpop.permute.xlu0 %1549
        %1551 = vrot.lane.b32.xlu0 %v1338, 2
        %v1552 = vpop.permute.xlu0 %1551
        %1553 = vrot.lane.b32.xlu0 %v1341, 2
        %v1554 = vpop.permute.xlu0 %1553
        %1555 = vrot.lane.b32.xlu0 %v1344, 2
        %v1556 = vpop.permute.xlu0 %1555
        %1557 = vrot.lane.b32.xlu0 %v1324, 2
        %v1558 = vpop.permute.xlu0 %1557
        %1559 = vrot.lane.b32.xlu0 %v1327, 2
        %v1560 = vpop.permute.xlu0 %1559
        %1561 = vrot.lane.b32.xlu0 %v1330, 2
        %v1562 = vpop.permute.xlu0 %1561
        %1563 = vrot.lane.b32.xlu0 %v1333, 2
        %v1564 = vpop.permute.xlu0 %1563
        %1565 = vrot.lane.b32.xlu0 %v1336, 2
        %v1566 = vpop.permute.xlu0 %1565
        %1567 = vrot.lane.b32.xlu0 %v1339, 2
        %v1568 = vpop.permute.xlu0 %1567
        %1569 = vrot.lane.b32.xlu0 %v1342, 2
        %v1570 = vpop.permute.xlu0 %1569
        %1571 = vrot.lane.b32.xlu0 %v1345, 2
        %v1572 = vpop.permute.xlu0 %1571
        %1573 = vrot.lane.b32.xlu0 %v1325, 2
        %v1574 = vpop.permute.xlu0 %1573
        %1575 = vrot.lane.b32.xlu0 %v1328, 2
        %v1576 = vpop.permute.xlu0 %1575
        %1577 = vrot.lane.b32.xlu0 %v1331, 2
        %v1578 = vpop.permute.xlu0 %1577
        %1579 = vrot.lane.b32.xlu0 %v1334, 2
        %v1580 = vpop.permute.xlu0 %1579
        %1581 = vrot.lane.b32.xlu0 %v1337, 2
        %v1582 = vpop.permute.xlu0 %1581
        %1583 = vrot.lane.b32.xlu0 %v1340, 2
        %v1584 = vpop.permute.xlu0 %1583
        %1585 = vrot.lane.b32.xlu0 %v1343, 2
        %v1586 = vpop.permute.xlu0 %1585
        %1587 = vrot.lane.b32.xlu0 %v1346, 2
        %v1588 = vpop.permute.xlu0 %1587
        %vm1589 = vcmp.lt.s32.totalorder %v359, 2
        %v1590 = vsel %vm1589, %v1558, %v1574
        %v1591 = vsel %vm1589, %v1560, %v1576
        %v1592 = vsel %vm1589, %v1562, %v1578
        %v1593 = vsel %vm1589, %v1564, %v1580
        %v1594 = vsel %vm1589, %v1566, %v1582
        %v1595 = vsel %vm1589, %v1568, %v1584
        %v1596 = vsel %vm1589, %v1570, %v1586
        %v1597 = vsel %vm1589, %v1572, %v1588
        %v1598 = vsel %vm1589, %v1542, %v1558
        %v1599 = vsel %vm1589, %v1544, %v1560
        %v1600 = vsel %vm1589, %v1546, %v1562
        %v1601 = vsel %vm1589, %v1548, %v1564
        %v1602 = vsel %vm1589, %v1550, %v1566
        %v1603 = vsel %vm1589, %v1552, %v1568
        %v1604 = vsel %vm1589, %v1554, %v1570
        %v1605 = vsel %vm1589, %v1556, %v1572
        %v1606 = vsel %vm1589, %v1574, %v1542
        %v1607 = vsel %vm1589, %v1576, %v1544
        %v1608 = vsel %vm1589, %v1578, %v1546
        %v1609 = vsel %vm1589, %v1580, %v1548
        %v1610 = vsel %vm1589, %v1582, %v1550
        %v1611 = vsel %vm1589, %v1584, %v1552
        %v1612 = vsel %vm1589, %v1586, %v1554
        %v1613 = vsel %vm1589, %v1588, %v1556
        %1614 = vrot.lane.b32.xlu0 %v1323, 126
        %v1615 = vpop.permute.xlu0 %1614
        %1616 = vrot.lane.b32.xlu0 %v1326, 126
        %v1617 = vpop.permute.xlu0 %1616
        %1618 = vrot.lane.b32.xlu0 %v1329, 126
        %v1619 = vpop.permute.xlu0 %1618
        %1620 = vrot.lane.b32.xlu0 %v1332, 126
        %v1621 = vpop.permute.xlu0 %1620
        %1622 = vrot.lane.b32.xlu0 %v1335, 126
        %v1623 = vpop.permute.xlu0 %1622
        %1624 = vrot.lane.b32.xlu0 %v1338, 126
        %v1625 = vpop.permute.xlu0 %1624
        %1626 = vrot.lane.b32.xlu0 %v1341, 126
        %v1627 = vpop.permute.xlu0 %1626
        %1628 = vrot.lane.b32.xlu0 %v1344, 126
        %v1629 = vpop.permute.xlu0 %1628
        %1630 = vrot.lane.b32.xlu0 %v1324, 126
        %v1631 = vpop.permute.xlu0 %1630
        %1632 = vrot.lane.b32.xlu0 %v1327, 126
        %v1633 = vpop.permute.xlu0 %1632
        %1634 = vrot.lane.b32.xlu0 %v1330, 126
        %v1635 = vpop.permute.xlu0 %1634
        %1636 = vrot.lane.b32.xlu0 %v1333, 126
        %v1637 = vpop.permute.xlu0 %1636
        %1638 = vrot.lane.b32.xlu0 %v1336, 126
        %v1639 = vpop.permute.xlu0 %1638
        %1640 = vrot.lane.b32.xlu0 %v1339, 126
        %v1641 = vpop.permute.xlu0 %1640
        %1642 = vrot.lane.b32.xlu0 %v1342, 126
        %v1643 = vpop.permute.xlu0 %1642
        %1644 = vrot.lane.b32.xlu0 %v1345, 126
        %v1645 = vpop.permute.xlu0 %1644
        %1646 = vrot.lane.b32.xlu0 %v1325, 126
        %v1647 = vpop.permute.xlu0 %1646
        %1648 = vrot.lane.b32.xlu0 %v1328, 126
        %v1649 = vpop.permute.xlu0 %1648
        %1650 = vrot.lane.b32.xlu0 %v1331, 126
        %v1651 = vpop.permute.xlu0 %1650
        %1652 = vrot.lane.b32.xlu0 %v1334, 126
        %v1653 = vpop.permute.xlu0 %1652
        %1654 = vrot.lane.b32.xlu0 %v1337, 126
        %v1655 = vpop.permute.xlu0 %1654
        %1656 = vrot.lane.b32.xlu0 %v1340, 126
        %v1657 = vpop.permute.xlu0 %1656
        %1658 = vrot.lane.b32.xlu0 %v1343, 126
        %v1659 = vpop.permute.xlu0 %1658
        %1660 = vrot.lane.b32.xlu0 %v1346, 126
        %v1661 = vpop.permute.xlu0 %1660
        %vm1662 = vcmp.lt.s32.totalorder %v359, 126
        %v1663 = vsel %vm1662, %v1631, %v1647
        %v1664 = vsel %vm1662, %v1633, %v1649
        %v1665 = vsel %vm1662, %v1635, %v1651
        %v1666 = vsel %vm1662, %v1637, %v1653
        %v1667 = vsel %vm1662, %v1639, %v1655
        %v1668 = vsel %vm1662, %v1641, %v1657
        %v1669 = vsel %vm1662, %v1643, %v1659
        %v1670 = vsel %vm1662, %v1645, %v1661
        %v1671 = vsel %vm1662, %v1615, %v1631
        %v1672 = vsel %vm1662, %v1617, %v1633
        %v1673 = vsel %vm1662, %v1619, %v1635
        %v1674 = vsel %vm1662, %v1621, %v1637
        %v1675 = vsel %vm1662, %v1623, %v1639
        %v1676 = vsel %vm1662, %v1625, %v1641
        %v1677 = vsel %vm1662, %v1627, %v1643
        %v1678 = vsel %vm1662, %v1629, %v1645
        %v1679 = vsel %vm1662, %v1647, %v1615
        %v1680 = vsel %vm1662, %v1649, %v1617
        %v1681 = vsel %vm1662, %v1651, %v1619
        %v1682 = vsel %vm1662, %v1653, %v1621
        %v1683 = vsel %vm1662, %v1655, %v1623
        %v1684 = vsel %vm1662, %v1657, %v1625
        %v1685 = vsel %vm1662, %v1659, %v1627
        %v1686 = vsel %vm1662, %v1661, %v1629
        %v1687 = vadd.f32 %v1517, %v1606
        %v1688 = vadd.f32 %v1518, %v1598
        %v1689 = vadd.f32 %v1519, %v1590
        %v1690 = vadd.f32 %v1520, %v1607
        %v1691 = vadd.f32 %v1521, %v1599
        %v1692 = vadd.f32 %v1522, %v1591
        %v1693 = vadd.f32 %v1523, %v1608
        %v1694 = vadd.f32 %v1524, %v1600
        %v1695 = vadd.f32 %v1525, %v1592
        %v1696 = vadd.f32 %v1526, %v1609
        %v1697 = vadd.f32 %v1527, %v1601
        %v1698 = vadd.f32 %v1528, %v1593
        %v1699 = vadd.f32 %v1529, %v1610
        %v1700 = vadd.f32 %v1530, %v1602
        %v1701 = vadd.f32 %v1531, %v1594
        %v1702 = vadd.f32 %v1532, %v1611
        %v1703 = vadd.f32 %v1533, %v1603
        %v1704 = vadd.f32 %v1534, %v1595
        %v1705 = vadd.f32 %v1535, %v1612
        %v1706 = vadd.f32 %v1536, %v1604
        %v1707 = vadd.f32 %v1537, %v1596
        %v1708 = vadd.f32 %v1538, %v1613
        %v1709 = vadd.f32 %v1539, %v1605
        %v1710 = vadd.f32 %v1540, %v1597
        %v1711 = vadd.f32 %v1687, %v1671
        %v1712 = vadd.f32 %v1688, %v1663
        %v1713 = vadd.f32 %v1689, %v1679
        %v1714 = vadd.f32 %v1690, %v1672
        %v1715 = vadd.f32 %v1691, %v1664
        %v1716 = vadd.f32 %v1692, %v1680
        %v1717 = vadd.f32 %v1693, %v1673
        %v1718 = vadd.f32 %v1694, %v1665
        %v1719 = vadd.f32 %v1695, %v1681
        %v1720 = vadd.f32 %v1696, %v1674
        %v1721 = vadd.f32 %v1697, %v1666
        %v1722 = vadd.f32 %v1698, %v1682
        %v1723 = vadd.f32 %v1699, %v1675
        %v1724 = vadd.f32 %v1700, %v1667
        %v1725 = vadd.f32 %v1701, %v1683
        %v1726 = vadd.f32 %v1702, %v1676
        %v1727 = vadd.f32 %v1703, %v1668
        %v1728 = vadd.f32 %v1704, %v1684
        %v1729 = vadd.f32 %v1705, %v1677
        %v1730 = vadd.f32 %v1706, %v1669
        %v1731 = vadd.f32 %v1707, %v1685
        %v1732 = vadd.f32 %v1708, %v1678
        %v1733 = vadd.f32 %v1709, %v1670
        %v1734 = vadd.f32 %v1710, %v1686
        %v1735 = vmul.f32 %v1711, 0.04
        %v1736 = vmul.f32 %v1712, 0.04
        %v1737 = vmul.f32 %v1713, 0.04
        %v1738 = vmul.f32 %v1714, 0.04
        %v1739 = vmul.f32 %v1715, 0.04
        %v1740 = vmul.f32 %v1716, 0.04
        %v1741 = vmul.f32 %v1717, 0.04
        %v1742 = vmul.f32 %v1718, 0.04
        %v1743 = vmul.f32 %v1719, 0.04
        %v1744 = vmul.f32 %v1720, 0.04
        %v1745 = vmul.f32 %v1721, 0.04
        %v1746 = vmul.f32 %v1722, 0.04
        %v1747 = vmul.f32 %v1723, 0.04
        %v1748 = vmul.f32 %v1724, 0.04
        %v1749 = vmul.f32 %v1725, 0.04
        %v1750 = vmul.f32 %v1726, 0.04
        %v1751 = vmul.f32 %v1727, 0.04
        %v1752 = vmul.f32 %v1728, 0.04
        %v1753 = vmul.f32 %v1729, 0.04
        %v1754 = vmul.f32 %v1730, 0.04
        %v1755 = vmul.f32 %v1731, 0.04
        %v1756 = vmul.f32 %v1732, 0.04
        %v1757 = vmul.f32 %v1733, 0.04
        %v1758 = vmul.f32 %v1734, 0.04
        %1759 = vst [vmem:[%s285] sm:$0xff] %v1735
        %1760 = vst [vmem:[%s285 + $0x8] sm:$0xff] %v1738
        %1761 = vst [vmem:[%s285 + $0x10] sm:$0xff] %v1741
        %1762 = vst [vmem:[%s285 + $0x18] sm:$0xff] %v1744
        %1763 = vst [vmem:[%s285 + $0x20] sm:$0xff] %v1747
        %1764 = vst [vmem:[%s285 + $0x28] sm:$0xff] %v1750
        %1765 = vst [vmem:[%s285 + $0x30] sm:$0xff] %v1753
        %1766 = vst [vmem:[%s285 + $0x38] sm:$0xff] %v1756
        %s1767 = scalar_lea.vmem %s285, 64 [#allocation7]
        %1768 = vst [vmem:[%s1767] sm:$0xff] %v1736
        %1769 = vst [vmem:[%s1767 + $0x8] sm:$0xff] %v1739
        %1770 = vst [vmem:[%s1767 + $0x10] sm:$0xff] %v1742
        %1771 = vst [vmem:[%s1767 + $0x18] sm:$0xff] %v1745
        %1772 = vst [vmem:[%s1767 + $0x20] sm:$0xff] %v1748
        %1773 = vst [vmem:[%s1767 + $0x28] sm:$0xff] %v1751
        %1774 = vst [vmem:[%s1767 + $0x30] sm:$0xff] %v1754
        %1775 = vst [vmem:[%s1767 + $0x38] sm:$0xff] %v1757
        %s1776 = scalar_lea.vmem %s285, 128 [#allocation7]
        %1777 = vst [vmem:[%s1776] sm:$0xff] %v1737
        %1778 = vst [vmem:[%s1776 + $0x8] sm:$0xff] %v1740
        %1779 = vst [vmem:[%s1776 + $0x10] sm:$0xff] %v1743
        %1780 = vst [vmem:[%s1776 + $0x18] sm:$0xff] %v1746
        %1781 = vst [vmem:[%s1776 + $0x20] sm:$0xff] %v1749
        %1782 = vst [vmem:[%s1776 + $0x28] sm:$0xff] %v1752
        %1783 = vst [vmem:[%s1776 + $0x30] sm:$0xff] %v1755
        %1784 = vst [vmem:[%s1776 + $0x38] sm:$0xff] %v1758
        %s1785 = sand.u32 %s106, 1
        %s1786 = scalar_lea.sflag [#allocation4], %s1785
        %s1787 = sand.u32 %s106, 1
        %s1788 = smul.addr %s1787, 192
        %s1789 = scalar_lea.vmem [#allocation7], %s1788
        %s1790 = sand.u32 %s28, 1
        %s1791 = scalar_lea.sflag [#allocation9], %s1790
        %s1792 = sand.u32 %s134, 1
        %s1793 = smul.addr %s1792, 192
        %s1794 = scalar_lea.vmem [#allocation8], %s1793
        %s1795 = sand.u32 %s28, 1
        %s1796 = scalar_lea.sflag [#allocation9], %s1795
        %s1797 = sand.u32 %s162, 1
        %s1798 = smul.addr %s1797, 16
        %s1799 = scalar_lea.vmem [#allocation10], %s1798
        // Predicated region
        $region37: #{tpu_custom_call.1} parent=27 // pred_check
          %p1800 = pneg %p116
        $region38: #{tpu_custom_call.1} parent=27 // pred_check_branch
          %1802 = sbr.rel (%p1800) target = $region40
        $region39: #{tpu_custom_call.1} parent=27 // pred_region
          #allocation12 [shape = 'u32[6]{0}', space=smem, size = 0x18, scoped, tag = 'DMA stride descriptor']
          %s1803 = smul.u32 8, %s33
          %s1805 = ssub.s32 3072, 3072
          %1806 = vsyncadd %s1786, %s1805
          %s1807 = smul.addr %s32, 72
          %s1808 = sadd.s32 %s1803, %s1807
          %s1809 = smul.addr %s1808, 128
          %s1810 = scalar_lea.hbm %s2, %s1809
          %s1812 = sshll.u32 1, 14
          %s1813 = sxor.u32 4294967295, %s1812
          %s1816 = sshll.u32 7, 18
          %s1817 = sxor.u32 4294967295, %s1816
          %s1818 = sand.u32 0, %s1817
          %s1820 = sor.u32 %s1818, 0
          %s1822 = sshll.u32 3, 24
          %s1823 = sxor.u32 4294967295, %s1822
          %s1824 = sand.u32 %s1820, %s1823
          %s1826 = sor.u32 %s1824, 0
          %s1827 = sshll.u32 %s1789, 4
          %s1828 = int_to_ptr.vmem [resolvable:$true] %s1827
          %1834 = sst [smem:[#allocation12]] 1024
          %s1835 = scalar_lea.smem [#allocation12], 1
          %1836 = sst [smem:[%s1835]] 3072
          %s1837 = scalar_lea.smem [#allocation12], 2
          %1838 = sst [smem:[%s1837]] 8
          %s1839 = scalar_lea.smem [#allocation12], 3
          %1840 = sst [smem:[%s1839]] 128
          %s1841 = scalar_lea.smem [#allocation12], 4
          %1842 = sst [smem:[%s1841]] 128
          %s1843 = scalar_lea.smem [#allocation12], 5
          %1844 = sst [smem:[%s1843]] 8
          %1846 = dma.general %s1828, 3072, %s1810, %s1786, [#allocation11], [#allocation12], %s1826, 0
        $region40: #{tpu_custom_call.1} parent=27 // pred_fallthru
          _
        // Predicated region
        $region41: #{tpu_custom_call.1} parent=27 // pred_check
          %p1847 = pneg %p144
        $region42: #{tpu_custom_call.1} parent=27 // pred_check_branch
          %1849 = sbr.rel (%p1847) target = $region44
        $region43: #{tpu_custom_call.1} parent=27 // pred_region
          #allocation14 [shape = 'u32[6]{0}', space=smem, size = 0x18, scoped, tag = 'DMA stride descriptor']
          %s1850 = smul.u32 8, %s33
          %s1852 = ssub.s32 3072, 3072
          %1853 = vsyncadd %s1791, %s1852
          %s1854 = smul.addr %s32, 72
          %s1855 = sadd.s32 %s1850, %s1854
          %s1856 = smul.addr %s1855, 128
          %s1857 = scalar_lea.hbm %s3, %s1856
          %s1859 = sshll.u32 1, 14
          %s1860 = sxor.u32 4294967295, %s1859
          %s1863 = sshll.u32 7, 18
          %s1864 = sxor.u32 4294967295, %s1863
          %s1865 = sand.u32 0, %s1864
          %s1867 = sor.u32 %s1865, 0
          %s1869 = sshll.u32 3, 24
          %s1870 = sxor.u32 4294967295, %s1869
          %s1871 = sand.u32 %s1867, %s1870
          %s1873 = sor.u32 %s1871, 0
          %s1874 = sshll.u32 %s1794, 4
          %s1875 = int_to_ptr.vmem [resolvable:$true] %s1874
          %1881 = sst [smem:[#allocation14]] 1024
          %s1882 = scalar_lea.smem [#allocation14], 1
          %1883 = sst [smem:[%s1882]] 3072
          %s1884 = scalar_lea.smem [#allocation14], 2
          %1885 = sst [smem:[%s1884]] 8
          %s1886 = scalar_lea.smem [#allocation14], 3
          %1887 = sst [smem:[%s1886]] 128
          %s1888 = scalar_lea.smem [#allocation14], 4
          %1889 = sst [smem:[%s1888]] 128
          %s1890 = scalar_lea.smem [#allocation14], 5
          %1891 = sst [smem:[%s1890]] 8
          %1893 = dma.general %s1875, 3072, %s1857, %s1791, [#allocation13], [#allocation14], %s1873, 0
        $region44: #{tpu_custom_call.1} parent=27 // pred_fallthru
          _
        // Predicated region
        $region45: #{tpu_custom_call.1} parent=27 // pred_check
          %p1894 = pneg %p172
        $region46: #{tpu_custom_call.1} parent=27 // pred_check_branch
          %1896 = sbr.rel (%p1894) target = $region48
        $region47: #{tpu_custom_call.1} parent=27 // pred_region
          %s1897 = smul.u32 2, %s33
          %s1899 = ssub.s32 256, 256
          %1900 = vsyncadd %s1796, %s1899
          %s1901 = smul.addr %s32, 6
          %s1902 = sadd.s32 %s1897, %s1901
          %s1903 = smul.addr %s1902, 128
          %s1904 = scalar_lea.hbm %s4, %s1903
          %s1905 = sshll.u32 %s1799, 4
          %s1906 = int_to_ptr.vmem [resolvable:$true] %s1905
          %1911 = dma.vmem_to_hbm [thread:$0]  %s1906, 256, %s1904, %s1796, 128, 128, 8
        $region48: #{tpu_custom_call.1} parent=27 // pred_fallthru
          _
      $region28: #{tpu_custom_call.1} parent=5 // pred_fallthru
        _
      %p1912 = scmp.le.s32.totalorder 2, %s23
      // Predicated region
      $region49: #{tpu_custom_call.1} parent=5 // pred_check
        %p1913 = pneg %p1912
      $region50: #{tpu_custom_call.1} parent=5 // pred_check_branch
        %1915 = sbr.rel (%p1913) target = $region52
      $region51: #{tpu_custom_call.1} parent=5 // pred_region
        %s1916 = ssub.s32 %s23, 2
        // Predicated region
        $region53: #{tpu_custom_call.1} parent=51 // pred_check
          %p1917 = pneg %p122
        $region54: #{tpu_custom_call.1} parent=51 // pred_check_branch
          %1919 = sbr.rel (%p1917) target = $region56
        $region55: #{tpu_custom_call.1} parent=51 // pred_region
          %s1920 = sand.u32 %s107, 1
          %s1921 = scalar_lea.sflag [#allocation4], %s1920
          %s1922 = sand.u32 %s107, 1
          %s1923 = smul.addr %s1922, 192
          %s1924 = scalar_lea.vmem [#allocation7], %s1923
          %1925 = dma.done %s1921, 3072
        $region56: #{tpu_custom_call.1} parent=51 // pred_fallthru
          _
        // Predicated region
        $region57: #{tpu_custom_call.1} parent=51 // pred_check
          %p1926 = pneg %p150
        $region58: #{tpu_custom_call.1} parent=51 // pred_check_branch
          %1928 = sbr.rel (%p1926) target = $region60
        $region59: #{tpu_custom_call.1} parent=51 // pred_region
          %s1929 = sand.u32 %s29, 1
          %s1930 = scalar_lea.sflag [#allocation9], %s1929
          %s1931 = sand.u32 %s135, 1
          %s1932 = smul.addr %s1931, 192
          %s1933 = scalar_lea.vmem [#allocation8], %s1932
          %1934 = dma.done %s1930, 3072
        $region60: #{tpu_custom_call.1} parent=51 // pred_fallthru
          _
        // Predicated region
        $region61: #{tpu_custom_call.1} parent=51 // pred_check
          %p1935 = pneg %p178
        $region62: #{tpu_custom_call.1} parent=51 // pred_check_branch
          %1937 = sbr.rel (%p1935) target = $region64
        $region63: #{tpu_custom_call.1} parent=51 // pred_region
          %s1938 = sand.u32 %s29, 1
          %s1939 = scalar_lea.sflag [#allocation9], %s1938
          %s1940 = sand.u32 %s163, 1
          %s1941 = smul.addr %s1940, 16
          %s1942 = scalar_lea.vmem [#allocation10], %s1941
          %1943 = dma.done %s1939, 256
        $region64: #{tpu_custom_call.1} parent=51 // pred_fallthru
          _
      $region52: #{tpu_custom_call.1} parent=5 // pred_fallthru
        _
    $region6: #{tpu_custom_call.1} parent=1 // loop_footer
      %s27 = sadd.s32 1, %s23
    $region7: #{tpu_custom_call.1} parent=1 // loop_footer_branch
      %22 = sbr.rel target = $region3
    $region8: #{tpu_custom_call.1} parent=1 // loop_exit
      _
    %1944 = vsyncpa [#allocation3], 1
    %s1945 = scalar_lea.sflag [#allocation3], 1
    %1946 = vsyncpa %s1945, 1
    %1947 = vsyncpa [#allocation6], 1
    %s1948 = scalar_lea.sflag [#allocation6], 1
    %1949 = vsyncpa %s1948, 1
    %1950 = vsyncpa [#allocation4], 1
    %s1951 = scalar_lea.sflag [#allocation4], 1
    %1952 = vsyncpa %s1951, 1
    %1953 = vsyncpa [#allocation9], 1
    %s1954 = scalar_lea.sflag [#allocation9], 1
    %1955 = vsyncpa %s1954, 1

</llo_original>
